<compile_context>
chip_gen: v6e
topology: v6e:2x2x1
jax: 0.10.0
libtpu: 0.0.40
codegen_flags: <defaults>
</compile_context>

<pallas_src>
import functools

import jax
import jax.numpy as jnp
from jax import lax
from jax.experimental import pallas as pl
from jax.experimental.pallas import tpu as pltpu


def centroid_forward_kernel(x_ref, wih_ref, whh_ref, b_ref,
                            wemb_ref, bemb_ref, cent_ref,
                            idx_ref, probs_ref, gx_ref,
                            *, seq_len, batch, hidden_dim):
    """Single-invocation kernel: LSTM -> mean pool -> linear -> centroid distances.

    x_ref   : (T*B, Din)  f32   time-major input, flattened over (t, b)
    wih_ref : (Din, 4H)   f32   LSTM input weights, pre-transposed, gate order [i,f,o,g]
    whh_ref : (H, 4H)     f32   LSTM hidden weights, pre-transposed, gate order [i,f,o,g]
    b_ref   : (1, 4H)     f32   b_ih + b_hh, gate order [i,f,o,g]
    wemb_ref: (H, L)      f32   embedder weight, pre-transposed
    bemb_ref: (1, L)      f32   embedder bias
    cent_ref: (L, C)      f32   class centroids, pre-transposed (sorted by class id)
    idx_ref : (B, 1)      i32   argmin class index  (out)
    probs_ref: (B, C)     f32   softmax(-dists)     (out)
    gx_ref  : (T*B, 4H)   f32   VMEM scratch for the hoisted input projection
    """
    T, B, H = seq_len, batch, hidden_dim
    C = cent_ref.shape[1]

    # Hoisted input projection + bias: ONE well-shaped matmul outside the recurrence.
    gx_ref[...] = (jnp.dot(x_ref[...], wih_ref[...],
                           preferred_element_type=jnp.float32)
                   + b_ref[...])                                # (T*B, 4H)

    whh = whh_ref[...]                                          # read once

    def step(t, carry):
        h, c, hsum = carry
        gates = gx_ref[pl.ds(t * B, B), :] + jnp.dot(
            h, whh, preferred_element_type=jnp.float32)         # (B, 4H)
        # gate order [i, f, o, g]: one sigmoid over contiguous lanes, one tanh
        sig = jax.nn.sigmoid(gates[:, :3 * H])
        g_g = jnp.tanh(gates[:, 3 * H:])
        i_g = sig[:, 0 * H:1 * H]
        f_g = sig[:, 1 * H:2 * H]
        o_g = sig[:, 2 * H:3 * H]
        c_new = f_g * c + i_g * g_g
        h_new = o_g * jnp.tanh(c_new)
        return h_new, c_new, hsum + h_new

    zeros_bh = jnp.zeros((B, H), jnp.float32)
    _, _, hsum = lax.fori_loop(0, T, step, (zeros_bh, zeros_bh, zeros_bh),
                               unroll=True)

    rnn_mean = hsum * jnp.float32(1.0 / T)                      # (B, H)
    emb = (jnp.dot(rnn_mean, wemb_ref[...],
                   preferred_element_type=jnp.float32)
           + bemb_ref[...])                                     # (B, L)

    # Squared euclidean distance via ||e||^2 + ||c||^2 - 2 e.c (MXU-friendly).
    cent_t = cent_ref[...]                                      # (L, C)
    emb_sq = jnp.sum(emb * emb, axis=1, keepdims=True)          # (B, 1)
    cent_sq = jnp.sum(cent_t * cent_t, axis=0, keepdims=True)   # (1, C)
    cross = jnp.dot(emb, cent_t, preferred_element_type=jnp.float32)  # (B, C)
    dists = emb_sq + cent_sq - 2.0 * cross                      # (B, C)

    # argmin over classes (first occurrence, like torch.argmin)
    min_d = jnp.min(dists, axis=1, keepdims=True)
    col = lax.broadcasted_iota(jnp.int32, (B, C), 1)
    idx = jnp.min(jnp.where(dists == min_d, col, jnp.int32(C)), axis=1, keepdims=True)
    idx_ref[...] = idx.astype(jnp.int32)

    # softmax(-dists, axis=1)
    neg = -dists
    m = jnp.max(neg, axis=1, keepdims=True)
    e = jnp.exp(neg - m)
    probs_ref[...] = e / jnp.sum(e, axis=1, keepdims=True)


def centroid_model_forward(x, params, centroids, class_nums):
    """Pallas-backed CentroidModel.forward. x: (B, T, Din) float."""
    x = x.astype(jnp.float32)
    B, T, Din = x.shape
    H = params["w_hh"].shape[1]
    C = centroids.shape[0]

    def reorder_gates(w):
        # PyTorch LSTM gate order [i, f, g, o] (stacked along dim 0) -> [i, f, o, g]
        i, f, g, o = jnp.split(w, 4, axis=0)
        return jnp.concatenate([i, f, o, g], axis=0)

    x2d = jnp.transpose(x, (1, 0, 2)).reshape(T * B, Din)       # time-major, flat (T*B, Din)
    wih_t = reorder_gates(params["w_ih"]).T                     # (Din, 4H), cols [i,f,o,g]
    whh_t = reorder_gates(params["w_hh"]).T                     # (H, 4H),   cols [i,f,o,g]
    b = reorder_gates(params["b_ih"] + params["b_hh"]).reshape(1, -1)  # (1, 4H)
    wemb_t = params["w_emb"].T                                  # (H, L)
    bemb = params["b_emb"].reshape(1, -1)                       # (1, L)
    cent_t = centroids.T                                        # (L, C)

    kernel = functools.partial(centroid_forward_kernel,
                               seq_len=T, batch=B, hidden_dim=H)
    vmem = pl.BlockSpec(memory_space=pltpu.MemorySpace.VMEM)
    idx, probs = pl.pallas_call(
        kernel,
        out_shape=(jax.ShapeDtypeStruct((B, 1), jnp.int32),
                   jax.ShapeDtypeStruct((B, C), jnp.float32)),
        in_specs=[vmem] * 7,
        out_specs=(vmem, vmem),
        scratch_shapes=[pltpu.VMEM((T * B, 4 * H), jnp.float32)],
    )(x2d, wih_t, whh_t, b, wemb_t, bemb, cent_t)

    decoded_class_nums = class_nums[idx[:, 0]]                  # gather (glue)
    return decoded_class_nums, probs


def reference_forward(x, params, centroids, class_nums):
    """Pure-JAX reference with identical math (for correctness check)."""
    x = x.astype(jnp.float32)
    B, T, _ = x.shape
    H = params["w_hh"].shape[1]
    h = jnp.zeros((B, H), jnp.float32)
    c = jnp.zeros((B, H), jnp.float32)
    outs = []
    for t in range(T):
        gates = (x[:, t, :] @ params["w_ih"].T + params["b_ih"]
                 + h @ params["w_hh"].T + params["b_hh"])
        i = jax.nn.sigmoid(gates[:, :H])
        f = jax.nn.sigmoid(gates[:, H:2 * H])
        g = jnp.tanh(gates[:, 2 * H:3 * H])
        o = jax.nn.sigmoid(gates[:, 3 * H:])
        c = f * c + i * g
        h = o * jnp.tanh(c)
        outs.append(h)
    rnn_mean = jnp.mean(jnp.stack(outs, axis=1), axis=1)
    emb = rnn_mean @ params["w_emb"].T + params["b_emb"]
    d = jnp.sum((emb[:, None, :] - centroids[None, :, :]) ** 2, axis=2)
    idx = jnp.argmin(d, axis=1)
    return class_nums[idx], jax.nn.softmax(-d, axis=1)


def init_params(key, input_dim, hidden_dim, latent_dim):
    """Deterministic init mimicking PyTorch LSTM/Linear uniform(-1/sqrt(H), 1/sqrt(H))."""
    k = 1.0 / jnp.sqrt(hidden_dim)
    keys = jax.random.split(key, 6)
    u = lambda kk, shape: jax.random.uniform(kk, shape, jnp.float32, -k, k)
    return {
        "w_ih": u(keys[0], (4 * hidden_dim, input_dim)),
        "w_hh": u(keys[1], (4 * hidden_dim, hidden_dim)),
        "b_ih": u(keys[2], (4 * hidden_dim,)),
        "b_hh": u(keys[3], (4 * hidden_dim,)),
        "w_emb": u(keys[4], (latent_dim, hidden_dim)),
        "b_emb": u(keys[5], (latent_dim,)),
    }


if __name__ == "__main__":
    B, T, DIN, H, L, C = 4, 8, 16, 32, 16, 4

    root = jax.random.PRNGKey(0)
    k_param, k_x, k_cent = jax.random.split(root, 3)

    params = init_params(k_param, DIN, H, L)
    x = jax.random.normal(k_x, (B, T, DIN), jnp.float32)

    # Synthetic centroid state (normally built by add_data_for_class); class ids arbitrary.
    centroids = jax.random.normal(k_cent, (C, L), jnp.float32)
    class_nums = jnp.array([2, 5, 7, 9], jnp.int32)

    decoded, probs = centroid_model_forward(x, params, centroids, class_nums)
    decoded, probs = jax.block_until_ready((decoded, probs))

    decoded_ref, probs_ref = reference_forward(x, params, centroids, class_nums)
    assert jnp.array_equal(decoded, decoded_ref), (decoded, decoded_ref)
    assert jnp.allclose(probs, probs_ref, rtol=1e-3, atol=1e-3), (probs, probs_ref)
    assert jnp.allclose(jnp.sum(probs, axis=1), 1.0, atol=1e-4)

    print("KERNEL_OK")
</pallas_src>

<mosaic_0001>
module attributes {stable_mosaic.version = 11 : i64} {
  func.func @centroid_forward_kernel(%arg0: memref<32x16xf32, #tpu.memory_space<vmem>>, %arg1: memref<16x128xf32, #tpu.memory_space<vmem>>, %arg2: memref<32x128xf32, #tpu.memory_space<vmem>>, %arg3: memref<1x128xf32, #tpu.memory_space<vmem>>, %arg4: memref<32x16xf32, #tpu.memory_space<vmem>>, %arg5: memref<1x16xf32, #tpu.memory_space<vmem>>, %arg6: memref<16x4xf32, #tpu.memory_space<vmem>>, %arg7: memref<4x1xi32, #tpu.memory_space<vmem>>, %arg8: memref<4x4xf32, #tpu.memory_space<vmem>>, %arg9: memref<32x128xf32, #tpu.memory_space<vmem>>) attributes {dimension_semantics = [], scalar_prefetch = 0 : i64, scratch_operands = 1 : i64, tpu.core_type = #tpu.core_type<tc>} {
    %c0 = arith.constant 0 : index
    %c0_0 = arith.constant 0 : index
    %0 = vector.load %arg0[%c0, %c0_0] : memref<32x16xf32, #tpu.memory_space<vmem>>, vector<32x16xf32>
    %c0_1 = arith.constant 0 : index
    %c0_2 = arith.constant 0 : index
    %1 = vector.load %arg1[%c0_1, %c0_2] : memref<16x128xf32, #tpu.memory_space<vmem>>, vector<16x128xf32>
    %cst = arith.constant dense<0.000000e+00> : vector<32x128xf32>
    %2 = tpu.matmul %0, %1, %cst {dimension_numbers = #tpu.dot_dimension_numbers<[1], [0], [0], [1], [0, 0, 1, 1], [], []>} : vector<32x16xf32>, vector<16x128xf32>, vector<32x128xf32> -> vector<32x128xf32>
    %c0_3 = arith.constant 0 : index
    %c0_4 = arith.constant 0 : index
    %3 = vector.load %arg3[%c0_3, %c0_4] : memref<1x128xf32, #tpu.memory_space<vmem>>, vector<1x128xf32>
    %4 = vector.broadcast %3 : vector<1x128xf32> to vector<32x128xf32>
    %5 = arith.addf %2, %4 : vector<32x128xf32>
    %c0_5 = arith.constant 0 : index
    %c0_6 = arith.constant 0 : index
    %6 = vector.load %arg9[%c0_5, %c0_6] : memref<32x128xf32, #tpu.memory_space<vmem>>, vector<32x128xf32>
    tpu.vector_store %arg9[%c0_5, %c0_6], %5 {strides = array<i32>} : memref<32x128xf32, #tpu.memory_space<vmem>>, vector<32x128xf32>,
    %c0_7 = arith.constant 0 : index
    %c0_8 = arith.constant 0 : index
    %7 = vector.load %arg2[%c0_7, %c0_8] : memref<32x128xf32, #tpu.memory_space<vmem>>, vector<32x128xf32>
    %cst_9 = arith.constant 0.000000e+00 : f32
    %8 = vector.broadcast %cst_9 : f32 to vector<4x32xf32>
    %c0_i32 = arith.constant 0 : i32
    %c4_i32 = arith.constant 4 : i32
    %9 = arith.muli %c0_i32, %c4_i32 : i32
    %10 = arith.index_cast %9 : i32 to index
    %c0_10 = arith.constant 0 : index
    %11 = vector.load %arg9[%10, %c0_10] : memref<32x128xf32, #tpu.memory_space<vmem>>, vector<4x128xf32>
    %cst_11 = arith.constant dense<0.000000e+00> : vector<4x128xf32>
    %12 = tpu.matmul %8, %7, %cst_11 {dimension_numbers = #tpu.dot_dimension_numbers<[1], [0], [0], [1], [0, 0, 1, 1], [], []>} : vector<4x32xf32>, vector<32x128xf32>, vector<4x128xf32> -> vector<4x128xf32>
    %13 = arith.addf %11, %12 : vector<4x128xf32>
    %14 = vector.extract_strided_slice %13 {offsets = [0, 0], sizes = [4, 96], strides = [1, 1]} : vector<4x128xf32> to vector<4x96xf32>
    %15 = arith.negf %14 : vector<4x96xf32>
    %16 = math.exp %15 : vector<4x96xf32>
    %cst_12 = arith.constant 1.000000e+00 : f32
    %17 = vector.broadcast %cst_12 : f32 to vector<4x96xf32>
    %18 = arith.addf %17, %16 : vector<4x96xf32>
    %19 = arith.divf %17, %18 : vector<4x96xf32>
    %20 = vector.extract_strided_slice %13 {offsets = [0, 96], sizes = [4, 32], strides = [1, 1]} : vector<4x128xf32> to vector<4x32xf32>
    %21 = math.tanh %20 : vector<4x32xf32>
    %22 = vector.extract_strided_slice %19 {offsets = [0, 0], sizes = [4, 32], strides = [1, 1]} : vector<4x96xf32> to vector<4x32xf32>
    %23 = vector.extract_strided_slice %19 {offsets = [0, 32], sizes = [4, 32], strides = [1, 1]} : vector<4x96xf32> to vector<4x32xf32>
    %24 = vector.extract_strided_slice %19 {offsets = [0, 64], sizes = [4, 32], strides = [1, 1]} : vector<4x96xf32> to vector<4x32xf32>
    %25 = arith.mulf %23, %8 : vector<4x32xf32>
    %26 = arith.mulf %22, %21 : vector<4x32xf32>
    %27 = arith.addf %25, %26 : vector<4x32xf32>
    %28 = math.tanh %27 : vector<4x32xf32>
    %29 = arith.mulf %24, %28 : vector<4x32xf32>
    %30 = arith.addf %8, %29 : vector<4x32xf32>
    %c1_i32 = arith.constant 1 : i32
    %c4_i32_13 = arith.constant 4 : i32
    %31 = arith.muli %c1_i32, %c4_i32_13 : i32
    %32 = arith.index_cast %31 : i32 to index
    %c0_14 = arith.constant 0 : index
    %33 = vector.load %arg9[%32, %c0_14] : memref<32x128xf32, #tpu.memory_space<vmem>>, vector<4x128xf32>
    %cst_15 = arith.constant dense<0.000000e+00> : vector<4x128xf32>
    %34 = tpu.matmul %29, %7, %cst_15 {dimension_numbers = #tpu.dot_dimension_numbers<[1], [0], [0], [1], [0, 0, 1, 1], [], []>} : vector<4x32xf32>, vector<32x128xf32>, vector<4x128xf32> -> vector<4x128xf32>
    %35 = arith.addf %33, %34 : vector<4x128xf32>
    %36 = vector.extract_strided_slice %35 {offsets = [0, 0], sizes = [4, 96], strides = [1, 1]} : vector<4x128xf32> to vector<4x96xf32>
    %37 = arith.negf %36 : vector<4x96xf32>
    %38 = math.exp %37 : vector<4x96xf32>
    %cst_16 = arith.constant 1.000000e+00 : f32
    %39 = vector.broadcast %cst_16 : f32 to vector<4x96xf32>
    %40 = arith.addf %39, %38 : vector<4x96xf32>
    %41 = arith.divf %39, %40 : vector<4x96xf32>
    %42 = vector.extract_strided_slice %35 {offsets = [0, 96], sizes = [4, 32], strides = [1, 1]} : vector<4x128xf32> to vector<4x32xf32>
    %43 = math.tanh %42 : vector<4x32xf32>
    %44 = vector.extract_strided_slice %41 {offsets = [0, 0], sizes = [4, 32], strides = [1, 1]} : vector<4x96xf32> to vector<4x32xf32>
    %45 = vector.extract_strided_slice %41 {offsets = [0, 32], sizes = [4, 32], strides = [1, 1]} : vector<4x96xf32> to vector<4x32xf32>
    %46 = vector.extract_strided_slice %41 {offsets = [0, 64], sizes = [4, 32], strides = [1, 1]} : vector<4x96xf32> to vector<4x32xf32>
    %47 = arith.mulf %45, %27 : vector<4x32xf32>
    %48 = arith.mulf %44, %43 : vector<4x32xf32>
    %49 = arith.addf %47, %48 : vector<4x32xf32>
    %50 = math.tanh %49 : vector<4x32xf32>
    %51 = arith.mulf %46, %50 : vector<4x32xf32>
    %52 = arith.addf %30, %51 : vector<4x32xf32>
    %c2_i32 = arith.constant 2 : i32
    %c4_i32_17 = arith.constant 4 : i32
    %53 = arith.muli %c2_i32, %c4_i32_17 : i32
    %54 = arith.index_cast %53 : i32 to index
    %c0_18 = arith.constant 0 : index
    %55 = vector.load %arg9[%54, %c0_18] : memref<32x128xf32, #tpu.memory_space<vmem>>, vector<4x128xf32>
    %cst_19 = arith.constant dense<0.000000e+00> : vector<4x128xf32>
    %56 = tpu.matmul %51, %7, %cst_19 {dimension_numbers = #tpu.dot_dimension_numbers<[1], [0], [0], [1], [0, 0, 1, 1], [], []>} : vector<4x32xf32>, vector<32x128xf32>, vector<4x128xf32> -> vector<4x128xf32>
    %57 = arith.addf %55, %56 : vector<4x128xf32>
    %58 = vector.extract_strided_slice %57 {offsets = [0, 0], sizes = [4, 96], strides = [1, 1]} : vector<4x128xf32> to vector<4x96xf32>
    %59 = arith.negf %58 : vector<4x96xf32>
    %60 = math.exp %59 : vector<4x96xf32>
    %cst_20 = arith.constant 1.000000e+00 : f32
    %61 = vector.broadcast %cst_20 : f32 to vector<4x96xf32>
    %62 = arith.addf %61, %60 : vector<4x96xf32>
    %63 = arith.divf %61, %62 : vector<4x96xf32>
    %64 = vector.extract_strided_slice %57 {offsets = [0, 96], sizes = [4, 32], strides = [1, 1]} : vector<4x128xf32> to vector<4x32xf32>
    %65 = math.tanh %64 : vector<4x32xf32>
    %66 = vector.extract_strided_slice %63 {offsets = [0, 0], sizes = [4, 32], strides = [1, 1]} : vector<4x96xf32> to vector<4x32xf32>
    %67 = vector.extract_strided_slice %63 {offsets = [0, 32], sizes = [4, 32], strides = [1, 1]} : vector<4x96xf32> to vector<4x32xf32>
    %68 = vector.extract_strided_slice %63 {offsets = [0, 64], sizes = [4, 32], strides = [1, 1]} : vector<4x96xf32> to vector<4x32xf32>
    %69 = arith.mulf %67, %49 : vector<4x32xf32>
    %70 = arith.mulf %66, %65 : vector<4x32xf32>
    %71 = arith.addf %69, %70 : vector<4x32xf32>
    %72 = math.tanh %71 : vector<4x32xf32>
    %73 = arith.mulf %68, %72 : vector<4x32xf32>
    %74 = arith.addf %52, %73 : vector<4x32xf32>
    %c3_i32 = arith.constant 3 : i32
    %c4_i32_21 = arith.constant 4 : i32
    %75 = arith.muli %c3_i32, %c4_i32_21 : i32
    %76 = arith.index_cast %75 : i32 to index
    %c0_22 = arith.constant 0 : index
    %77 = vector.load %arg9[%76, %c0_22] : memref<32x128xf32, #tpu.memory_space<vmem>>, vector<4x128xf32>
    %cst_23 = arith.constant dense<0.000000e+00> : vector<4x128xf32>
    %78 = tpu.matmul %73, %7, %cst_23 {dimension_numbers = #tpu.dot_dimension_numbers<[1], [0], [0], [1], [0, 0, 1, 1], [], []>} : vector<4x32xf32>, vector<32x128xf32>, vector<4x128xf32> -> vector<4x128xf32>
    %79 = arith.addf %77, %78 : vector<4x128xf32>
    %80 = vector.extract_strided_slice %79 {offsets = [0, 0], sizes = [4, 96], strides = [1, 1]} : vector<4x128xf32> to vector<4x96xf32>
    %81 = arith.negf %80 : vector<4x96xf32>
    %82 = math.exp %81 : vector<4x96xf32>
    %cst_24 = arith.constant 1.000000e+00 : f32
    %83 = vector.broadcast %cst_24 : f32 to vector<4x96xf32>
    %84 = arith.addf %83, %82 : vector<4x96xf32>
    %85 = arith.divf %83, %84 : vector<4x96xf32>
    %86 = vector.extract_strided_slice %79 {offsets = [0, 96], sizes = [4, 32], strides = [1, 1]} : vector<4x128xf32> to vector<4x32xf32>
    %87 = math.tanh %86 : vector<4x32xf32>
    %88 = vector.extract_strided_slice %85 {offsets = [0, 0], sizes = [4, 32], strides = [1, 1]} : vector<4x96xf32> to vector<4x32xf32>
    %89 = vector.extract_strided_slice %85 {offsets = [0, 32], sizes = [4, 32], strides = [1, 1]} : vector<4x96xf32> to vector<4x32xf32>
    %90 = vector.extract_strided_slice %85 {offsets = [0, 64], sizes = [4, 32], strides = [1, 1]} : vector<4x96xf32> to vector<4x32xf32>
    %91 = arith.mulf %89, %71 : vector<4x32xf32>
    %92 = arith.mulf %88, %87 : vector<4x32xf32>
    %93 = arith.addf %91, %92 : vector<4x32xf32>
    %94 = math.tanh %93 : vector<4x32xf32>
    %95 = arith.mulf %90, %94 : vector<4x32xf32>
    %96 = arith.addf %74, %95 : vector<4x32xf32>
    %c4_i32_25 = arith.constant 4 : i32
    %c4_i32_26 = arith.constant 4 : i32
    %97 = arith.muli %c4_i32_25, %c4_i32_26 : i32
    %98 = arith.index_cast %97 : i32 to index
    %c0_27 = arith.constant 0 : index
    %99 = vector.load %arg9[%98, %c0_27] : memref<32x128xf32, #tpu.memory_space<vmem>>, vector<4x128xf32>
    %cst_28 = arith.constant dense<0.000000e+00> : vector<4x128xf32>
    %100 = tpu.matmul %95, %7, %cst_28 {dimension_numbers = #tpu.dot_dimension_numbers<[1], [0], [0], [1], [0, 0, 1, 1], [], []>} : vector<4x32xf32>, vector<32x128xf32>, vector<4x128xf32> -> vector<4x128xf32>
    %101 = arith.addf %99, %100 : vector<4x128xf32>
    %102 = vector.extract_strided_slice %101 {offsets = [0, 0], sizes = [4, 96], strides = [1, 1]} : vector<4x128xf32> to vector<4x96xf32>
    %103 = arith.negf %102 : vector<4x96xf32>
    %104 = math.exp %103 : vector<4x96xf32>
    %cst_29 = arith.constant 1.000000e+00 : f32
    %105 = vector.broadcast %cst_29 : f32 to vector<4x96xf32>
    %106 = arith.addf %105, %104 : vector<4x96xf32>
    %107 = arith.divf %105, %106 : vector<4x96xf32>
    %108 = vector.extract_strided_slice %101 {offsets = [0, 96], sizes = [4, 32], strides = [1, 1]} : vector<4x128xf32> to vector<4x32xf32>
    %109 = math.tanh %108 : vector<4x32xf32>
    %110 = vector.extract_strided_slice %107 {offsets = [0, 0], sizes = [4, 32], strides = [1, 1]} : vector<4x96xf32> to vector<4x32xf32>
    %111 = vector.extract_strided_slice %107 {offsets = [0, 32], sizes = [4, 32], strides = [1, 1]} : vector<4x96xf32> to vector<4x32xf32>
    %112 = vector.extract_strided_slice %107 {offsets = [0, 64], sizes = [4, 32], strides = [1, 1]} : vector<4x96xf32> to vector<4x32xf32>
    %113 = arith.mulf %111, %93 : vector<4x32xf32>
    %114 = arith.mulf %110, %109 : vector<4x32xf32>
    %115 = arith.addf %113, %114 : vector<4x32xf32>
    %116 = math.tanh %115 : vector<4x32xf32>
    %117 = arith.mulf %112, %116 : vector<4x32xf32>
    %118 = arith.addf %96, %117 : vector<4x32xf32>
    %c5_i32 = arith.constant 5 : i32
    %c4_i32_30 = arith.constant 4 : i32
    %119 = arith.muli %c5_i32, %c4_i32_30 : i32
    %120 = arith.index_cast %119 : i32 to index
    %c0_31 = arith.constant 0 : index
    %121 = vector.load %arg9[%120, %c0_31] : memref<32x128xf32, #tpu.memory_space<vmem>>, vector<4x128xf32>
    %cst_32 = arith.constant dense<0.000000e+00> : vector<4x128xf32>
    %122 = tpu.matmul %117, %7, %cst_32 {dimension_numbers = #tpu.dot_dimension_numbers<[1], [0], [0], [1], [0, 0, 1, 1], [], []>} : vector<4x32xf32>, vector<32x128xf32>, vector<4x128xf32> -> vector<4x128xf32>
    %123 = arith.addf %121, %122 : vector<4x128xf32>
    %124 = vector.extract_strided_slice %123 {offsets = [0, 0], sizes = [4, 96], strides = [1, 1]} : vector<4x128xf32> to vector<4x96xf32>
    %125 = arith.negf %124 : vector<4x96xf32>
    %126 = math.exp %125 : vector<4x96xf32>
    %cst_33 = arith.constant 1.000000e+00 : f32
    %127 = vector.broadcast %cst_33 : f32 to vector<4x96xf32>
    %128 = arith.addf %127, %126 : vector<4x96xf32>
    %129 = arith.divf %127, %128 : vector<4x96xf32>
    %130 = vector.extract_strided_slice %123 {offsets = [0, 96], sizes = [4, 32], strides = [1, 1]} : vector<4x128xf32> to vector<4x32xf32>
    %131 = math.tanh %130 : vector<4x32xf32>
    %132 = vector.extract_strided_slice %129 {offsets = [0, 0], sizes = [4, 32], strides = [1, 1]} : vector<4x96xf32> to vector<4x32xf32>
    %133 = vector.extract_strided_slice %129 {offsets = [0, 32], sizes = [4, 32], strides = [1, 1]} : vector<4x96xf32> to vector<4x32xf32>
    %134 = vector.extract_strided_slice %129 {offsets = [0, 64], sizes = [4, 32], strides = [1, 1]} : vector<4x96xf32> to vector<4x32xf32>
    %135 = arith.mulf %133, %115 : vector<4x32xf32>
    %136 = arith.mulf %132, %131 : vector<4x32xf32>
    %137 = arith.addf %135, %136 : vector<4x32xf32>
    %138 = math.tanh %137 : vector<4x32xf32>
    %139 = arith.mulf %134, %138 : vector<4x32xf32>
    %140 = arith.addf %118, %139 : vector<4x32xf32>
    %c6_i32 = arith.constant 6 : i32
    %c4_i32_34 = arith.constant 4 : i32
    %141 = arith.muli %c6_i32, %c4_i32_34 : i32
    %142 = arith.index_cast %141 : i32 to index
    %c0_35 = arith.constant 0 : index
    %143 = vector.load %arg9[%142, %c0_35] : memref<32x128xf32, #tpu.memory_space<vmem>>, vector<4x128xf32>
    %cst_36 = arith.constant dense<0.000000e+00> : vector<4x128xf32>
    %144 = tpu.matmul %139, %7, %cst_36 {dimension_numbers = #tpu.dot_dimension_numbers<[1], [0], [0], [1], [0, 0, 1, 1], [], []>} : vector<4x32xf32>, vector<32x128xf32>, vector<4x128xf32> -> vector<4x128xf32>
    %145 = arith.addf %143, %144 : vector<4x128xf32>
    %146 = vector.extract_strided_slice %145 {offsets = [0, 0], sizes = [4, 96], strides = [1, 1]} : vector<4x128xf32> to vector<4x96xf32>
    %147 = arith.negf %146 : vector<4x96xf32>
    %148 = math.exp %147 : vector<4x96xf32>
    %cst_37 = arith.constant 1.000000e+00 : f32
    %149 = vector.broadcast %cst_37 : f32 to vector<4x96xf32>
    %150 = arith.addf %149, %148 : vector<4x96xf32>
    %151 = arith.divf %149, %150 : vector<4x96xf32>
    %152 = vector.extract_strided_slice %145 {offsets = [0, 96], sizes = [4, 32], strides = [1, 1]} : vector<4x128xf32> to vector<4x32xf32>
    %153 = math.tanh %152 : vector<4x32xf32>
    %154 = vector.extract_strided_slice %151 {offsets = [0, 0], sizes = [4, 32], strides = [1, 1]} : vector<4x96xf32> to vector<4x32xf32>
    %155 = vector.extract_strided_slice %151 {offsets = [0, 32], sizes = [4, 32], strides = [1, 1]} : vector<4x96xf32> to vector<4x32xf32>
    %156 = vector.extract_strided_slice %151 {offsets = [0, 64], sizes = [4, 32], strides = [1, 1]} : vector<4x96xf32> to vector<4x32xf32>
    %157 = arith.mulf %155, %137 : vector<4x32xf32>
    %158 = arith.mulf %154, %153 : vector<4x32xf32>
    %159 = arith.addf %157, %158 : vector<4x32xf32>
    %160 = math.tanh %159 : vector<4x32xf32>
    %161 = arith.mulf %156, %160 : vector<4x32xf32>
    %162 = arith.addf %140, %161 : vector<4x32xf32>
    %c7_i32 = arith.constant 7 : i32
    %c4_i32_38 = arith.constant 4 : i32
    %163 = arith.muli %c7_i32, %c4_i32_38 : i32
    %164 = arith.index_cast %163 : i32 to index
    %c0_39 = arith.constant 0 : index
    %165 = vector.load %arg9[%164, %c0_39] : memref<32x128xf32, #tpu.memory_space<vmem>>, vector<4x128xf32>
    %cst_40 = arith.constant dense<0.000000e+00> : vector<4x128xf32>
    %166 = tpu.matmul %161, %7, %cst_40 {dimension_numbers = #tpu.dot_dimension_numbers<[1], [0], [0], [1], [0, 0, 1, 1], [], []>} : vector<4x32xf32>, vector<32x128xf32>, vector<4x128xf32> -> vector<4x128xf32>
    %167 = arith.addf %165, %166 : vector<4x128xf32>
    %168 = vector.extract_strided_slice %167 {offsets = [0, 0], sizes = [4, 96], strides = [1, 1]} : vector<4x128xf32> to vector<4x96xf32>
    %169 = arith.negf %168 : vector<4x96xf32>
    %170 = math.exp %169 : vector<4x96xf32>
    %cst_41 = arith.constant 1.000000e+00 : f32
    %171 = vector.broadcast %cst_41 : f32 to vector<4x96xf32>
    %172 = arith.addf %171, %170 : vector<4x96xf32>
    %173 = arith.divf %171, %172 : vector<4x96xf32>
    %174 = vector.extract_strided_slice %167 {offsets = [0, 96], sizes = [4, 32], strides = [1, 1]} : vector<4x128xf32> to vector<4x32xf32>
    %175 = math.tanh %174 : vector<4x32xf32>
    %176 = vector.extract_strided_slice %173 {offsets = [0, 0], sizes = [4, 32], strides = [1, 1]} : vector<4x96xf32> to vector<4x32xf32>
    %177 = vector.extract_strided_slice %173 {offsets = [0, 32], sizes = [4, 32], strides = [1, 1]} : vector<4x96xf32> to vector<4x32xf32>
    %178 = vector.extract_strided_slice %173 {offsets = [0, 64], sizes = [4, 32], strides = [1, 1]} : vector<4x96xf32> to vector<4x32xf32>
    %179 = arith.mulf %177, %159 : vector<4x32xf32>
    %180 = arith.mulf %176, %175 : vector<4x32xf32>
    %181 = arith.addf %179, %180 : vector<4x32xf32>
    %182 = math.tanh %181 : vector<4x32xf32>
    %183 = arith.mulf %178, %182 : vector<4x32xf32>
    %184 = arith.addf %162, %183 : vector<4x32xf32>
    %c8_i32 = arith.constant 8 : i32
    %cst_42 = arith.constant 1.250000e-01 : f32
    %185 = vector.broadcast %cst_42 : f32 to vector<4x32xf32>
    %186 = arith.mulf %184, %185 : vector<4x32xf32>
    %c0_43 = arith.constant 0 : index
    %c0_44 = arith.constant 0 : index
    %187 = vector.load %arg4[%c0_43, %c0_44] : memref<32x16xf32, #tpu.memory_space<vmem>>, vector<32x16xf32>
    %cst_45 = arith.constant dense<0.000000e+00> : vector<4x16xf32>
    %188 = tpu.matmul %186, %187, %cst_45 {dimension_numbers = #tpu.dot_dimension_numbers<[1], [0], [0], [1], [0, 0, 1, 1], [], []>} : vector<4x32xf32>, vector<32x16xf32>, vector<4x16xf32> -> vector<4x16xf32>
    %c0_46 = arith.constant 0 : index
    %c0_47 = arith.constant 0 : index
    %189 = vector.load %arg5[%c0_46, %c0_47] : memref<1x16xf32, #tpu.memory_space<vmem>>, vector<1x16xf32>
    %190 = vector.broadcast %189 : vector<1x16xf32> to vector<4x16xf32>
    %191 = arith.addf %188, %190 : vector<4x16xf32>
    %c0_48 = arith.constant 0 : index
    %c0_49 = arith.constant 0 : index
    %192 = vector.load %arg6[%c0_48, %c0_49] : memref<16x4xf32, #tpu.memory_space<vmem>>, vector<16x4xf32>
    %193 = arith.mulf %191, %191 : vector<4x16xf32>
    %cst_50 = arith.constant dense<0.000000e+00> : vector<4xf32>
    %194 = vector.multi_reduction <add>, %193, %cst_50 [1] : vector<4x16xf32> to vector<4xf32>
    %195 = vector.shape_cast %194 : vector<4xf32> to vector<4x1xf32>
    %196 = arith.mulf %192, %192 : vector<16x4xf32>
    %cst_51 = arith.constant dense<0.000000e+00> : vector<4xf32>
    %197 = vector.multi_reduction <add>, %196, %cst_51 [0] : vector<16x4xf32> to vector<4xf32>
    %198 = vector.shape_cast %197 : vector<4xf32> to vector<1x4xf32>
    %cst_52 = arith.constant dense<0.000000e+00> : vector<4x4xf32>
    %199 = tpu.matmul %191, %192, %cst_52 {dimension_numbers = #tpu.dot_dimension_numbers<[1], [0], [0], [1], [0, 0, 1, 1], [], []>} : vector<4x16xf32>, vector<16x4xf32>, vector<4x4xf32> -> vector<4x4xf32>
    %200 = vector.broadcast %195 : vector<4x1xf32> to vector<4x4xf32>
    %201 = vector.broadcast %198 : vector<1x4xf32> to vector<4x4xf32>
    %202 = arith.addf %200, %201 : vector<4x4xf32>
    %cst_53 = arith.constant 2.000000e+00 : f32
    %203 = vector.broadcast %cst_53 : f32 to vector<4x4xf32>
    %204 = arith.mulf %203, %199 : vector<4x4xf32>
    %205 = arith.subf %202, %204 : vector<4x4xf32>
    %cst_54 = arith.constant dense<0x7F800000> : vector<4xf32>
    %206 = vector.multi_reduction <minimumf>, %205, %cst_54 [1] : vector<4x4xf32> to vector<4xf32>
    %207 = vector.shape_cast %206 : vector<4xf32> to vector<4x1xf32>
    %208 = tpu.iota {dimensions = array<i32: 1>} : vector<4x4xi32>
    %209 = vector.broadcast %207 : vector<4x1xf32> to vector<4x4xf32>
    %210 = arith.cmpf oeq, %205, %209 : vector<4x4xf32>
    %c4_i32_55 = arith.constant 4 : i32
    %211 = vector.broadcast %c4_i32_55 : i32 to vector<4x4xi32>
    %212 = arith.select %210, %208, %211 : vector<4x4xi1>, vector<4x4xi32>
    %cst_56 = arith.constant dense<2147483647> : vector<4xi32>
    %213 = vector.multi_reduction <minsi>, %212, %cst_56 [1] : vector<4x4xi32> to vector<4xi32>
    %214 = vector.shape_cast %213 : vector<4xi32> to vector<4x1xi32>
    %c0_57 = arith.constant 0 : index
    %c0_58 = arith.constant 0 : index
    %215 = vector.load %arg7[%c0_57, %c0_58] : memref<4x1xi32, #tpu.memory_space<vmem>>, vector<4x1xi32>
    tpu.vector_store %arg7[%c0_57, %c0_58], %214 {strides = array<i32>} : memref<4x1xi32, #tpu.memory_space<vmem>>, vector<4x1xi32>,
    %cst_59 = arith.constant 0.000000e+00 : f32
    %216 = vector.broadcast %cst_59 : f32 to vector<4x4xf32>
    %217 = arith.subf %216, %205 : vector<4x4xf32>
    %cst_60 = arith.constant dense<0xFF800000> : vector<4xf32>
    %218 = vector.multi_reduction <maximumf>, %217, %cst_60 [1] : vector<4x4xf32> to vector<4xf32>
    %219 = vector.shape_cast %218 : vector<4xf32> to vector<4x1xf32>
    %220 = vector.broadcast %219 : vector<4x1xf32> to vector<4x4xf32>
    %221 = arith.subf %217, %220 : vector<4x4xf32>
    %222 = math.exp %221 : vector<4x4xf32>
    %cst_61 = arith.constant dense<0.000000e+00> : vector<4xf32>
    %223 = vector.multi_reduction <add>, %222, %cst_61 [1] : vector<4x4xf32> to vector<4xf32>
    %224 = vector.shape_cast %223 : vector<4xf32> to vector<4x1xf32>
    %225 = vector.broadcast %224 : vector<4x1xf32> to vector<4x4xf32>
    %226 = arith.divf %222, %225 : vector<4x4xf32>
    %c0_62 = arith.constant 0 : index
    %c0_63 = arith.constant 0 : index
    %227 = vector.load %arg8[%c0_62, %c0_63] : memref<4x4xf32, #tpu.memory_space<vmem>>, vector<4x4xf32>
    tpu.vector_store %arg8[%c0_62, %c0_63], %226 {strides = array<i32>} : memref<4x4xf32, #tpu.memory_space<vmem>>, vector<4x4xf32>,
    return
  }
}

</mosaic_0001>

<llo_original>
// kernel: tpu_custom_call.1
$region0: #{tpu_custom_call.1}
  #allocation0 [shape = 'u32[]', space=smem, size = 0x4, offset = 0x4, fixed_abs, tag = 'smem constant byte address 0x4 - core index']
  #allocation1 [shape = 'u32[144,128]{1,0:T(1,128)}', space=vmem, size = 0x12000, scoped, tag = 'internal scratch']
  #allocation2 [shape = 'f32[32,128]{1,0:T(8,128)}', space=vmem, size = 0x4000, scoped, tag = 'scratch operand']
  %s0 = inlined_call_operand.vmem [shape: f32[32,16], index: 0, kind: input, shape index: {}]
  %s1 = inlined_call_operand.vmem [shape: f32[16,128], index: 1, kind: input, shape index: {}]
  %s2 = inlined_call_operand.vmem [shape: f32[32,128], index: 2, kind: input, shape index: {}]
  %s3 = inlined_call_operand.vmem [shape: f32[1,128], index: 3, kind: input, shape index: {}]
  %s4 = inlined_call_operand.vmem [shape: f32[32,16], index: 4, kind: input, shape index: {}]
  %s5 = inlined_call_operand.vmem [shape: f32[1,16], index: 5, kind: input, shape index: {}]
  %s6 = inlined_call_operand.vmem [shape: f32[16,4], index: 6, kind: input, shape index: {}]
  %s7 = inlined_call_operand.vmem [shape: s32[4,1], index: 7, kind: output, shape index: {0}]
  %s8 = inlined_call_operand.hbm [shape: f32[4,4], index: 8, kind: output, shape index: {1}]
  %9 = xla_tuple %s7, %s8
  %s10 = sld [smem:[#allocation0]]
  $region46: #{tpu_custom_call.1} parent=0
    _
  %s12 = ssub.s32 1, %s10
  %s13 = scalar_select 0, %s12, %s10
  $region1: #{tpu_custom_call.1} parent=0
    #allocation3 [shape = 'u8[2048]{0}', space=vmem, size = 0x800, scoped, tag = 'output window, operand 1, single buffered']
    #allocation4 [shape = 's32[1]{0}', space=sflag, size = 0x4, scoped, tag = 'scoped memory for tpu_custom_call.1']
    %14 = vsyncpa [#allocation4], 0
    // Predicated region
    $region2: #{tpu_custom_call.1} parent=1 // pred_check
      _
    $region3: #{tpu_custom_call.1} parent=1 // pred_check_branch
      %16 = sbr.rel (0) target = $region5
    $region4: #{tpu_custom_call.1} parent=1 // pred_region
      _
    $region5: #{tpu_custom_call.1} parent=1 // pred_fallthru
      _
    // Predicated region
    $region6: #{tpu_custom_call.1} parent=1 // pred_check
      _
    $region7: #{tpu_custom_call.1} parent=1 // pred_check_branch
      %18 = sbr.rel (0) target = $region9
    $region8: #{tpu_custom_call.1} parent=1 // pred_region
      _
    $region9: #{tpu_custom_call.1} parent=1 // pred_fallthru
      _
    // Predicated region
    $region10: #{tpu_custom_call.1} parent=1 // pred_check
      _
    $region11: #{tpu_custom_call.1} parent=1 // pred_check_branch
      %20 = sbr.rel (0) target = $region13
    $region12: #{tpu_custom_call.1} parent=1 // pred_region
      _
    $region13: #{tpu_custom_call.1} parent=1 // pred_fallthru
      _
    // Predicated region
    $region14: #{tpu_custom_call.1} parent=1 // pred_check
      _
    $region15: #{tpu_custom_call.1} parent=1 // pred_check_branch
      %22 = sbr.rel (0) target = $region17
    $region16: #{tpu_custom_call.1} parent=1 // pred_region
      _
    $region17: #{tpu_custom_call.1} parent=1 // pred_fallthru
      _
    // Predicated region
    $region18: #{tpu_custom_call.1} parent=1 // pred_check
      _
    $region19: #{tpu_custom_call.1} parent=1 // pred_check_branch
      %24 = sbr.rel (0) target = $region21
    $region20: #{tpu_custom_call.1} parent=1 // pred_region
      _
    $region21: #{tpu_custom_call.1} parent=1 // pred_fallthru
      _
    // Predicated region
    $region22: #{tpu_custom_call.1} parent=1 // pred_check
      _
    $region23: #{tpu_custom_call.1} parent=1 // pred_check_branch
      %26 = sbr.rel (0) target = $region25
    $region24: #{tpu_custom_call.1} parent=1 // pred_region
      _
    $region25: #{tpu_custom_call.1} parent=1 // pred_fallthru
      _
    // Predicated region
    $region26: #{tpu_custom_call.1} parent=1 // pred_check
      _
    $region27: #{tpu_custom_call.1} parent=1 // pred_check_branch
      %28 = sbr.rel (0) target = $region29
    $region28: #{tpu_custom_call.1} parent=1 // pred_region
      _
    $region29: #{tpu_custom_call.1} parent=1 // pred_fallthru
      _
    %v29 = vld [vmem:[%s0] sm:$0xff]
    %v30 = vld [vmem:[%s0 + $0x8] sm:$0xff]
    %v31 = vld [vmem:[%s0 + $0x10] sm:$0xff]
    %v32 = vld [vmem:[%s0 + $0x18] sm:$0xff]
    %v33 = vld [vmem:[%s1] sm:$0xff]
    %v34 = vld [vmem:[%s1 + $0x8] sm:$0xff]
    %v35 = vld [vmem:[%s3] sm:$0x1]
    %v37 = vlaneseq
    %v38 = vshrl.u32 %v37, 7
    %v39 = vsub.s32 0, %v38
    %v40 = vrot.slane %v35, %v39
    %vm42 = vcmask 130048
    %v44 = vsel %vm42, %v29, 0
    %v47 = vsel %vm42, %v30, 0
    %v50 = vsel %vm42, %v31, 0
    %v53 = vsel %vm42, %v32, 0
    %55 = vmatprep.subr.mxu0 0.0
    %56 = vmatpush1.msra.mxu0 0.0
    %57 = vmatprep.subr.mxu0 0.0
    %58 = vmatpush1.msra.mxu0 0.0
    %59 = vmatprep.subr.mxu0 0.0
    %60 = vmatpush1.msra.mxu0 0.0
    %61 = vmatprep.subr.mxu0 0.0
    %62 = vmatpush1.msra.mxu0 0.0
    %63 = vmatprep.subr.mxu0 0.0
    %64 = vmatpush1.msra.mxu0 0.0
    %65 = vmatprep.subr.mxu0 0.0
    %66 = vmatpush1.msra.mxu0 0.0
    %67 = vmatprep.subr.mxu0 0.0
    %68 = vmatpush1.msra.mxu0 0.0
    %69 = vmatprep.subr.mxu0 0.0
    %70 = vmatpush1.msra.mxu0 0.0
    %71 = vmatprep.subr.mxu0 0.0
    %72 = vmatpush1.msra.mxu0 0.0
    %73 = vmatprep.subr.mxu0 0.0
    %74 = vmatpush1.msra.mxu0 0.0
    %75 = vmatprep.subr.mxu0 0.0
    %76 = vmatpush1.msra.mxu0 0.0
    %77 = vmatprep.subr.mxu0 0.0
    %78 = vmatpush1.msra.mxu0 0.0
    %79 = vmatprep.subr.mxu0 0.0
    %80 = vmatpush1.msra.mxu0 0.0
    %81 = vmatprep.subr.mxu0 0.0
    %82 = vmatpush1.msra.mxu0 0.0
    %83 = vmatprep.subr.mxu0 0.0
    %84 = vmatpush1.msra.mxu0 %v34
    %85 = vmatprep.subr.mxu0 0.0
    %86 = vmatpush1.msra.mxu0 %v33
    %87 = vmatprep.subr.mxu0 0.0
    %88 = vmatpush2.msra.mxu0 0.0
    %89 = vmatprep.subr.mxu0 0.0
    %90 = vmatpush2.msra.mxu0 0.0
    %91 = vmatprep.subr.mxu0 0.0
    %92 = vmatpush2.msra.mxu0 0.0
    %93 = vmatprep.subr.mxu0 0.0
    %94 = vmatpush2.msra.mxu0 0.0
    %95 = vmatprep.subr.mxu0 0.0
    %96 = vmatpush2.msra.mxu0 0.0
    %97 = vmatprep.subr.mxu0 0.0
    %98 = vmatpush2.msra.mxu0 0.0
    %99 = vmatprep.subr.mxu0 0.0
    %100 = vmatpush2.msra.mxu0 0.0
    %101 = vmatprep.subr.mxu0 0.0
    %102 = vmatpush2.msra.mxu0 0.0
    %103 = vmatprep.subr.mxu0 0.0
    %104 = vmatpush2.msra.mxu0 0.0
    %105 = vmatprep.subr.mxu0 0.0
    %106 = vmatpush2.msra.mxu0 0.0
    %107 = vmatprep.subr.mxu0 0.0
    %108 = vmatpush2.msra.mxu0 0.0
    %109 = vmatprep.subr.mxu0 0.0
    %110 = vmatpush2.msra.mxu0 0.0
    %111 = vmatprep.subr.mxu0 0.0
    %112 = vmatpush2.msra.mxu0 0.0
    %113 = vmatprep.subr.mxu0 0.0
    %114 = vmatpush2.msra.mxu0 0.0
    %115 = vmatprep.subr.mxu0 0.0
    %116 = vmatpush2.msra.mxu0 0.0
    %117 = vmatprep.subr.mxu0 0.0
    %118 = vmatpush2.msra.mxu0 0.0
    %119 = vmatprep.mubr.f32.mxu0 0.0
    %120 = vmatmul.mubr.f32.gmra.mxu0 %v44
    %v121 = vpop.f32.mrf.mxu0
    %v122 = vadd.f32 %v40, %v121
    %v123 = vpop.f32.mrf.mxu0
    %124 = vmatprep.mubr.f32.mxu0 0.0
    %125 = vmatmul.mubr.f32.gmra.mxu0 %v47
    %v126 = vpop.f32.mrf.mxu0
    %v127 = vadd.f32 %v40, %v126
    %v128 = vpop.f32.mrf.mxu0
    %129 = vmatprep.mubr.f32.mxu0 0.0
    %130 = vmatmul.mubr.f32.gmra.mxu0 %v50
    %v131 = vpop.f32.mrf.mxu0
    %v132 = vadd.f32 %v40, %v131
    %v133 = vpop.f32.mrf.mxu0
    %134 = vmatprep.mubr.f32.mxu0 0.0
    %135 = vmatmul.mubr.f32.gmra.mxu0 %v53
    %v136 = vpop.f32.mrf.mxu0
    %v137 = vadd.f32 %v40, %v136
    %v138 = vpop.f32.mrf.mxu0
    %139 = vdwg.mxu0
    %140 = vst [vmem:[#allocation2] sm:$0xff] %v122
    %141 = vst [vmem:[#allocation2 + $0x8] sm:$0xff] %v127
    %142 = vst [vmem:[#allocation2 + $0x10] sm:$0xff] %v132
    %143 = vst [vmem:[#allocation2 + $0x18] sm:$0xff] %v137
    %v144 = vld [vmem:[%s2] sm:$0xff]
    %v145 = vld [vmem:[%s2 + $0x8] sm:$0xff]
    %v146 = vld [vmem:[%s2 + $0x10] sm:$0xff]
    %v147 = vld [vmem:[%s2 + $0x18] sm:$0xff]
    %v148 = vld [vmem:[#allocation2] sm:$0xf]
    %vm149 = vcmask 261120
    %v151 = vsel %vm149, 0.0, 0
    %153 = vmatprep.subr.mxu0 0.0
    %154 = vmatpush1.msra.mxu0 0.0
    %155 = vmatprep.subr.mxu0 0.0
    %156 = vmatpush1.msra.mxu0 0.0
    %157 = vmatprep.subr.mxu0 0.0
    %158 = vmatpush1.msra.mxu0 0.0
    %159 = vmatprep.subr.mxu0 0.0
    %160 = vmatpush1.msra.mxu0 0.0
    %161 = vmatprep.subr.mxu0 0.0
    %162 = vmatpush1.msra.mxu0 0.0
    %163 = vmatprep.subr.mxu0 0.0
    %164 = vmatpush1.msra.mxu0 0.0
    %165 = vmatprep.subr.mxu0 0.0
    %166 = vmatpush1.msra.mxu0 0.0
    %167 = vmatprep.subr.mxu0 0.0
    %168 = vmatpush1.msra.mxu0 0.0
    %169 = vmatprep.subr.mxu0 0.0
    %170 = vmatpush1.msra.mxu0 0.0
    %171 = vmatprep.subr.mxu0 0.0
    %172 = vmatpush1.msra.mxu0 0.0
    %173 = vmatprep.subr.mxu0 0.0
    %174 = vmatpush1.msra.mxu0 0.0
    %175 = vmatprep.subr.mxu0 0.0
    %176 = vmatpush1.msra.mxu0 0.0
    %177 = vmatprep.subr.mxu0 0.0
    %178 = vmatpush1.msra.mxu0 %v147
    %179 = vmatprep.subr.mxu0 0.0
    %180 = vmatpush1.msra.mxu0 %v146
    %181 = vmatprep.subr.mxu0 0.0
    %182 = vmatpush1.msra.mxu0 %v145
    %183 = vmatprep.subr.mxu0 0.0
    %184 = vmatpush1.msra.mxu0 %v144
    %185 = vmatprep.subr.mxu0 0.0
    %186 = vmatpush2.msra.mxu0 0.0
    %187 = vmatprep.subr.mxu0 0.0
    %188 = vmatpush2.msra.mxu0 0.0
    %189 = vmatprep.subr.mxu0 0.0
    %190 = vmatpush2.msra.mxu0 0.0
    %191 = vmatprep.subr.mxu0 0.0
    %192 = vmatpush2.msra.mxu0 0.0
    %193 = vmatprep.subr.mxu0 0.0
    %194 = vmatpush2.msra.mxu0 0.0
    %195 = vmatprep.subr.mxu0 0.0
    %196 = vmatpush2.msra.mxu0 0.0
    %197 = vmatprep.subr.mxu0 0.0
    %198 = vmatpush2.msra.mxu0 0.0
    %199 = vmatprep.subr.mxu0 0.0
    %200 = vmatpush2.msra.mxu0 0.0
    %201 = vmatprep.subr.mxu0 0.0
    %202 = vmatpush2.msra.mxu0 0.0
    %203 = vmatprep.subr.mxu0 0.0
    %204 = vmatpush2.msra.mxu0 0.0
    %205 = vmatprep.subr.mxu0 0.0
    %206 = vmatpush2.msra.mxu0 0.0
    %207 = vmatprep.subr.mxu0 0.0
    %208 = vmatpush2.msra.mxu0 0.0
    %209 = vmatprep.subr.mxu0 0.0
    %210 = vmatpush2.msra.mxu0 0.0
    %211 = vmatprep.subr.mxu0 0.0
    %212 = vmatpush2.msra.mxu0 0.0
    %213 = vmatprep.subr.mxu0 0.0
    %214 = vmatpush2.msra.mxu0 0.0
    %215 = vmatprep.subr.mxu0 0.0
    %216 = vmatpush2.msra.mxu0 0.0
    %217 = vmatprep.mubr.f32.mxu0 0.0
    %218 = vmatmul.mubr.f32.gmra.mxu0 %v151
    %v219 = vpop.f32.mrf.mxu0
    %v220 = vadd.f32 0.0, %v219
    %v221 = vpop.f32.mrf.mxu0
    %222 = vdwg.mxu0
    %v223 = vadd.f32 %v148, %v220
    %v224 = vxor.u32 %v223, 2147483648
    %v225 = vmul.f32 %v224, 1.442695
    %v226 = vpow.pop %v225
    %v227 = vadd.f32 %v226, 1.0
    %v228 = vrcp.pop %v227
    %v229 = vmul.f32 1.0, %v228
    %v230 = vtanh.pop %v223
    %v231 = vmul.f32 %v229, 0.0
    %233 = vrot.lane.b32.xlu0 %v230, 32
    %v234 = vpop.permute.xlu0 %233
    %v236 = vmul.f32 %v229, %v234
    %238 = vrot.lane.b32.xlu0 %v236, 32
    %v239 = vpop.permute.xlu0 %238
    %v241 = vadd.f32 %v231, %v239
    %v242 = vtanh.pop %v241
    %244 = vrot.lane.b32.xlu0 %v242, 32
    %v245 = vpop.permute.xlu0 %244
    %v247 = vmul.f32 %v229, %v245
    %v248 = vadd.f32 %v247, 0.0
    %v249 = vld [vmem:[#allocation2 + $0x4] sm:$0xf]
    %251 = vrot.lane.b32.xlu0 %v247, 64
    %v252 = vpop.permute.xlu0 %251
    %v253 = vsel %vm149, %v252, 0
    %255 = vmatprep.subr.mxu0 0.0
    %256 = vmatpush1.msra.mxu0 0.0
    %257 = vmatprep.subr.mxu0 0.0
    %258 = vmatpush1.msra.mxu0 0.0
    %259 = vmatprep.subr.mxu0 0.0
    %260 = vmatpush1.msra.mxu0 0.0
    %261 = vmatprep.subr.mxu0 0.0
    %262 = vmatpush1.msra.mxu0 0.0
    %263 = vmatprep.subr.mxu0 0.0
    %264 = vmatpush1.msra.mxu0 0.0
    %265 = vmatprep.subr.mxu0 0.0
    %266 = vmatpush1.msra.mxu0 0.0
    %267 = vmatprep.subr.mxu0 0.0
    %268 = vmatpush1.msra.mxu0 0.0
    %269 = vmatprep.subr.mxu0 0.0
    %270 = vmatpush1.msra.mxu0 0.0
    %271 = vmatprep.subr.mxu0 0.0
    %272 = vmatpush1.msra.mxu0 0.0
    %273 = vmatprep.subr.mxu0 0.0
    %274 = vmatpush1.msra.mxu0 0.0
    %275 = vmatprep.subr.mxu0 0.0
    %276 = vmatpush1.msra.mxu0 0.0
    %277 = vmatprep.subr.mxu0 0.0
    %278 = vmatpush1.msra.mxu0 0.0
    %279 = vmatprep.subr.mxu0 0.0
    %280 = vmatpush1.msra.mxu0 %v147
    %281 = vmatprep.subr.mxu0 0.0
    %282 = vmatpush1.msra.mxu0 %v146
    %283 = vmatprep.subr.mxu0 0.0
    %284 = vmatpush1.msra.mxu0 %v145
    %285 = vmatprep.subr.mxu0 0.0
    %286 = vmatpush1.msra.mxu0 %v144
    %287 = vmatprep.subr.mxu0 0.0
    %288 = vmatpush2.msra.mxu0 0.0
    %289 = vmatprep.subr.mxu0 0.0
    %290 = vmatpush2.msra.mxu0 0.0
    %291 = vmatprep.subr.mxu0 0.0
    %292 = vmatpush2.msra.mxu0 0.0
    %293 = vmatprep.subr.mxu0 0.0
    %294 = vmatpush2.msra.mxu0 0.0
    %295 = vmatprep.subr.mxu0 0.0
    %296 = vmatpush2.msra.mxu0 0.0
    %297 = vmatprep.subr.mxu0 0.0
    %298 = vmatpush2.msra.mxu0 0.0
    %299 = vmatprep.subr.mxu0 0.0
    %300 = vmatpush2.msra.mxu0 0.0
    %301 = vmatprep.subr.mxu0 0.0
    %302 = vmatpush2.msra.mxu0 0.0
    %303 = vmatprep.subr.mxu0 0.0
    %304 = vmatpush2.msra.mxu0 0.0
    %305 = vmatprep.subr.mxu0 0.0
    %306 = vmatpush2.msra.mxu0 0.0
    %307 = vmatprep.subr.mxu0 0.0
    %308 = vmatpush2.msra.mxu0 0.0
    %309 = vmatprep.subr.mxu0 0.0
    %310 = vmatpush2.msra.mxu0 0.0
    %311 = vmatprep.subr.mxu0 0.0
    %312 = vmatpush2.msra.mxu0 0.0
    %313 = vmatprep.subr.mxu0 0.0
    %314 = vmatpush2.msra.mxu0 0.0
    %315 = vmatprep.subr.mxu0 0.0
    %316 = vmatpush2.msra.mxu0 0.0
    %317 = vmatprep.subr.mxu0 0.0
    %318 = vmatpush2.msra.mxu0 0.0
    %319 = vmatprep.mubr.f32.mxu0 0.0
    %320 = vmatmul.mubr.f32.gmra.mxu0 %v253
    %v321 = vpop.f32.mrf.mxu0
    %v322 = vadd.f32 0.0, %v321
    %v323 = vpop.f32.mrf.mxu0
    %324 = vdwg.mxu0
    %v325 = vadd.f32 %v249, %v322
    %v326 = vxor.u32 %v325, 2147483648
    %v327 = vmul.f32 %v326, 1.442695
    %v328 = vpow.pop %v327
    %v329 = vadd.f32 %v328, 1.0
    %v330 = vrcp.pop %v329
    %v331 = vmul.f32 1.0, %v330
    %v332 = vtanh.pop %v325
    %v333 = vmul.f32 %v331, %v241
    %335 = vrot.lane.b32.xlu0 %v332, 32
    %v336 = vpop.permute.xlu0 %335
    %v338 = vmul.f32 %v331, %v336
    %340 = vrot.lane.b32.xlu0 %v338, 32
    %v341 = vpop.permute.xlu0 %340
    %v343 = vadd.f32 %v333, %v341
    %v344 = vtanh.pop %v343
    %346 = vrot.lane.b32.xlu0 %v344, 32
    %v347 = vpop.permute.xlu0 %346
    %v349 = vmul.f32 %v331, %v347
    %v350 = vadd.f32 %v248, %v349
    %v351 = vld [vmem:[#allocation2 + $0x8] sm:$0xf]
    %353 = vrot.lane.b32.xlu0 %v349, 64
    %v354 = vpop.permute.xlu0 %353
    %v355 = vsel %vm149, %v354, 0
    %357 = vmatprep.subr.mxu0 0.0
    %358 = vmatpush1.msra.mxu0 0.0
    %359 = vmatprep.subr.mxu0 0.0
    %360 = vmatpush1.msra.mxu0 0.0
    %361 = vmatprep.subr.mxu0 0.0
    %362 = vmatpush1.msra.mxu0 0.0
    %363 = vmatprep.subr.mxu0 0.0
    %364 = vmatpush1.msra.mxu0 0.0
    %365 = vmatprep.subr.mxu0 0.0
    %366 = vmatpush1.msra.mxu0 0.0
    %367 = vmatprep.subr.mxu0 0.0
    %368 = vmatpush1.msra.mxu0 0.0
    %369 = vmatprep.subr.mxu0 0.0
    %370 = vmatpush1.msra.mxu0 0.0
    %371 = vmatprep.subr.mxu0 0.0
    %372 = vmatpush1.msra.mxu0 0.0
    %373 = vmatprep.subr.mxu0 0.0
    %374 = vmatpush1.msra.mxu0 0.0
    %375 = vmatprep.subr.mxu0 0.0
    %376 = vmatpush1.msra.mxu0 0.0
    %377 = vmatprep.subr.mxu0 0.0
    %378 = vmatpush1.msra.mxu0 0.0
    %379 = vmatprep.subr.mxu0 0.0
    %380 = vmatpush1.msra.mxu0 0.0
    %381 = vmatprep.subr.mxu0 0.0
    %382 = vmatpush1.msra.mxu0 %v147
    %383 = vmatprep.subr.mxu0 0.0
    %384 = vmatpush1.msra.mxu0 %v146
    %385 = vmatprep.subr.mxu0 0.0
    %386 = vmatpush1.msra.mxu0 %v145
    %387 = vmatprep.subr.mxu0 0.0
    %388 = vmatpush1.msra.mxu0 %v144
    %389 = vmatprep.subr.mxu0 0.0
    %390 = vmatpush2.msra.mxu0 0.0
    %391 = vmatprep.subr.mxu0 0.0
    %392 = vmatpush2.msra.mxu0 0.0
    %393 = vmatprep.subr.mxu0 0.0
    %394 = vmatpush2.msra.mxu0 0.0
    %395 = vmatprep.subr.mxu0 0.0
    %396 = vmatpush2.msra.mxu0 0.0
    %397 = vmatprep.subr.mxu0 0.0
    %398 = vmatpush2.msra.mxu0 0.0
    %399 = vmatprep.subr.mxu0 0.0
    %400 = vmatpush2.msra.mxu0 0.0
    %401 = vmatprep.subr.mxu0 0.0
    %402 = vmatpush2.msra.mxu0 0.0
    %403 = vmatprep.subr.mxu0 0.0
    %404 = vmatpush2.msra.mxu0 0.0
    %405 = vmatprep.subr.mxu0 0.0
    %406 = vmatpush2.msra.mxu0 0.0
    %407 = vmatprep.subr.mxu0 0.0
    %408 = vmatpush2.msra.mxu0 0.0
    %409 = vmatprep.subr.mxu0 0.0
    %410 = vmatpush2.msra.mxu0 0.0
    %411 = vmatprep.subr.mxu0 0.0
    %412 = vmatpush2.msra.mxu0 0.0
    %413 = vmatprep.subr.mxu0 0.0
    %414 = vmatpush2.msra.mxu0 0.0
    %415 = vmatprep.subr.mxu0 0.0
    %416 = vmatpush2.msra.mxu0 0.0
    %417 = vmatprep.subr.mxu0 0.0
    %418 = vmatpush2.msra.mxu0 0.0
    %419 = vmatprep.subr.mxu0 0.0
    %420 = vmatpush2.msra.mxu0 0.0
    %421 = vmatprep.mubr.f32.mxu0 0.0
    %422 = vmatmul.mubr.f32.gmra.mxu0 %v355
    %v423 = vpop.f32.mrf.mxu0
    %v424 = vadd.f32 0.0, %v423
    %v425 = vpop.f32.mrf.mxu0
    %426 = vdwg.mxu0
    %v427 = vadd.f32 %v351, %v424
    %v428 = vxor.u32 %v427, 2147483648
    %v429 = vmul.f32 %v428, 1.442695
    %v430 = vpow.pop %v429
    %v431 = vadd.f32 %v430, 1.0
    %v432 = vrcp.pop %v431
    %v433 = vmul.f32 1.0, %v432
    %v434 = vtanh.pop %v427
    %v435 = vmul.f32 %v433, %v343
    %437 = vrot.lane.b32.xlu0 %v434, 32
    %v438 = vpop.permute.xlu0 %437
    %v440 = vmul.f32 %v433, %v438
    %442 = vrot.lane.b32.xlu0 %v440, 32
    %v443 = vpop.permute.xlu0 %442
    %v445 = vadd.f32 %v435, %v443
    %v446 = vtanh.pop %v445
    %448 = vrot.lane.b32.xlu0 %v446, 32
    %v449 = vpop.permute.xlu0 %448
    %v451 = vmul.f32 %v433, %v449
    %v452 = vadd.f32 %v350, %v451
    %v453 = vld [vmem:[#allocation2 + $0xc] sm:$0xf]
    %455 = vrot.lane.b32.xlu0 %v451, 64
    %v456 = vpop.permute.xlu0 %455
    %v457 = vsel %vm149, %v456, 0
    %459 = vmatprep.subr.mxu0 0.0
    %460 = vmatpush1.msra.mxu0 0.0
    %461 = vmatprep.subr.mxu0 0.0
    %462 = vmatpush1.msra.mxu0 0.0
    %463 = vmatprep.subr.mxu0 0.0
    %464 = vmatpush1.msra.mxu0 0.0
    %465 = vmatprep.subr.mxu0 0.0
    %466 = vmatpush1.msra.mxu0 0.0
    %467 = vmatprep.subr.mxu0 0.0
    %468 = vmatpush1.msra.mxu0 0.0
    %469 = vmatprep.subr.mxu0 0.0
    %470 = vmatpush1.msra.mxu0 0.0
    %471 = vmatprep.subr.mxu0 0.0
    %472 = vmatpush1.msra.mxu0 0.0
    %473 = vmatprep.subr.mxu0 0.0
    %474 = vmatpush1.msra.mxu0 0.0
    %475 = vmatprep.subr.mxu0 0.0
    %476 = vmatpush1.msra.mxu0 0.0
    %477 = vmatprep.subr.mxu0 0.0
    %478 = vmatpush1.msra.mxu0 0.0
    %479 = vmatprep.subr.mxu0 0.0
    %480 = vmatpush1.msra.mxu0 0.0
    %481 = vmatprep.subr.mxu0 0.0
    %482 = vmatpush1.msra.mxu0 0.0
    %483 = vmatprep.subr.mxu0 0.0
    %484 = vmatpush1.msra.mxu0 %v147
    %485 = vmatprep.subr.mxu0 0.0
    %486 = vmatpush1.msra.mxu0 %v146
    %487 = vmatprep.subr.mxu0 0.0
    %488 = vmatpush1.msra.mxu0 %v145
    %489 = vmatprep.subr.mxu0 0.0
    %490 = vmatpush1.msra.mxu0 %v144
    %491 = vmatprep.subr.mxu0 0.0
    %492 = vmatpush2.msra.mxu0 0.0
    %493 = vmatprep.subr.mxu0 0.0
    %494 = vmatpush2.msra.mxu0 0.0
    %495 = vmatprep.subr.mxu0 0.0
    %496 = vmatpush2.msra.mxu0 0.0
    %497 = vmatprep.subr.mxu0 0.0
    %498 = vmatpush2.msra.mxu0 0.0
    %499 = vmatprep.subr.mxu0 0.0
    %500 = vmatpush2.msra.mxu0 0.0
    %501 = vmatprep.subr.mxu0 0.0
    %502 = vmatpush2.msra.mxu0 0.0
    %503 = vmatprep.subr.mxu0 0.0
    %504 = vmatpush2.msra.mxu0 0.0
    %505 = vmatprep.subr.mxu0 0.0
    %506 = vmatpush2.msra.mxu0 0.0
    %507 = vmatprep.subr.mxu0 0.0
    %508 = vmatpush2.msra.mxu0 0.0
    %509 = vmatprep.subr.mxu0 0.0
    %510 = vmatpush2.msra.mxu0 0.0
    %511 = vmatprep.subr.mxu0 0.0
    %512 = vmatpush2.msra.mxu0 0.0
    %513 = vmatprep.subr.mxu0 0.0
    %514 = vmatpush2.msra.mxu0 0.0
    %515 = vmatprep.subr.mxu0 0.0
    %516 = vmatpush2.msra.mxu0 0.0
    %517 = vmatprep.subr.mxu0 0.0
    %518 = vmatpush2.msra.mxu0 0.0
    %519 = vmatprep.subr.mxu0 0.0
    %520 = vmatpush2.msra.mxu0 0.0
    %521 = vmatprep.subr.mxu0 0.0
    %522 = vmatpush2.msra.mxu0 0.0
    %523 = vmatprep.mubr.f32.mxu0 0.0
    %524 = vmatmul.mubr.f32.gmra.mxu0 %v457
    %v525 = vpop.f32.mrf.mxu0
    %v526 = vadd.f32 0.0, %v525
    %v527 = vpop.f32.mrf.mxu0
    %528 = vdwg.mxu0
    %v529 = vadd.f32 %v453, %v526
    %v530 = vxor.u32 %v529, 2147483648
    %v531 = vmul.f32 %v530, 1.442695
    %v532 = vpow.pop %v531
    %v533 = vadd.f32 %v532, 1.0
    %v534 = vrcp.pop %v533
    %v535 = vmul.f32 1.0, %v534
    %v536 = vtanh.pop %v529
    %v537 = vmul.f32 %v535, %v445
    %539 = vrot.lane.b32.xlu0 %v536, 32
    %v540 = vpop.permute.xlu0 %539
    %v542 = vmul.f32 %v535, %v540
    %544 = vrot.lane.b32.xlu0 %v542, 32
    %v545 = vpop.permute.xlu0 %544
    %v547 = vadd.f32 %v537, %v545
    %v548 = vtanh.pop %v547
    %550 = vrot.lane.b32.xlu0 %v548, 32
    %v551 = vpop.permute.xlu0 %550
    %v553 = vmul.f32 %v535, %v551
    %v554 = vadd.f32 %v452, %v553
    %v555 = vld [vmem:[#allocation2 + $0x10] sm:$0xf]
    %557 = vrot.lane.b32.xlu0 %v553, 64
    %v558 = vpop.permute.xlu0 %557
    %v559 = vsel %vm149, %v558, 0
    %561 = vmatprep.subr.mxu0 0.0
    %562 = vmatpush1.msra.mxu0 0.0
    %563 = vmatprep.subr.mxu0 0.0
    %564 = vmatpush1.msra.mxu0 0.0
    %565 = vmatprep.subr.mxu0 0.0
    %566 = vmatpush1.msra.mxu0 0.0
    %567 = vmatprep.subr.mxu0 0.0
    %568 = vmatpush1.msra.mxu0 0.0
    %569 = vmatprep.subr.mxu0 0.0
    %570 = vmatpush1.msra.mxu0 0.0
    %571 = vmatprep.subr.mxu0 0.0
    %572 = vmatpush1.msra.mxu0 0.0
    %573 = vmatprep.subr.mxu0 0.0
    %574 = vmatpush1.msra.mxu0 0.0
    %575 = vmatprep.subr.mxu0 0.0
    %576 = vmatpush1.msra.mxu0 0.0
    %577 = vmatprep.subr.mxu0 0.0
    %578 = vmatpush1.msra.mxu0 0.0
    %579 = vmatprep.subr.mxu0 0.0
    %580 = vmatpush1.msra.mxu0 0.0
    %581 = vmatprep.subr.mxu0 0.0
    %582 = vmatpush1.msra.mxu0 0.0
    %583 = vmatprep.subr.mxu0 0.0
    %584 = vmatpush1.msra.mxu0 0.0
    %585 = vmatprep.subr.mxu0 0.0
    %586 = vmatpush1.msra.mxu0 %v147
    %587 = vmatprep.subr.mxu0 0.0
    %588 = vmatpush1.msra.mxu0 %v146
    %589 = vmatprep.subr.mxu0 0.0
    %590 = vmatpush1.msra.mxu0 %v145
    %591 = vmatprep.subr.mxu0 0.0
    %592 = vmatpush1.msra.mxu0 %v144
    %593 = vmatprep.subr.mxu0 0.0
    %594 = vmatpush2.msra.mxu0 0.0
    %595 = vmatprep.subr.mxu0 0.0
    %596 = vmatpush2.msra.mxu0 0.0
    %597 = vmatprep.subr.mxu0 0.0
    %598 = vmatpush2.msra.mxu0 0.0
    %599 = vmatprep.subr.mxu0 0.0
    %600 = vmatpush2.msra.mxu0 0.0
    %601 = vmatprep.subr.mxu0 0.0
    %602 = vmatpush2.msra.mxu0 0.0
    %603 = vmatprep.subr.mxu0 0.0
    %604 = vmatpush2.msra.mxu0 0.0
    %605 = vmatprep.subr.mxu0 0.0
    %606 = vmatpush2.msra.mxu0 0.0
    %607 = vmatprep.subr.mxu0 0.0
    %608 = vmatpush2.msra.mxu0 0.0
    %609 = vmatprep.subr.mxu0 0.0
    %610 = vmatpush2.msra.mxu0 0.0
    %611 = vmatprep.subr.mxu0 0.0
    %612 = vmatpush2.msra.mxu0 0.0
    %613 = vmatprep.subr.mxu0 0.0
    %614 = vmatpush2.msra.mxu0 0.0
    %615 = vmatprep.subr.mxu0 0.0
    %616 = vmatpush2.msra.mxu0 0.0
    %617 = vmatprep.subr.mxu0 0.0
    %618 = vmatpush2.msra.mxu0 0.0
    %619 = vmatprep.subr.mxu0 0.0
    %620 = vmatpush2.msra.mxu0 0.0
    %621 = vmatprep.subr.mxu0 0.0
    %622 = vmatpush2.msra.mxu0 0.0
    %623 = vmatprep.subr.mxu0 0.0
    %624 = vmatpush2.msra.mxu0 0.0
    %625 = vmatprep.mubr.f32.mxu0 0.0
    %626 = vmatmul.mubr.f32.gmra.mxu0 %v559
    %v627 = vpop.f32.mrf.mxu0
    %v628 = vadd.f32 0.0, %v627
    %v629 = vpop.f32.mrf.mxu0
    %630 = vdwg.mxu0
    %v631 = vadd.f32 %v555, %v628
    %v632 = vxor.u32 %v631, 2147483648
    %v633 = vmul.f32 %v632, 1.442695
    %v634 = vpow.pop %v633
    %v635 = vadd.f32 %v634, 1.0
    %v636 = vrcp.pop %v635
    %v637 = vmul.f32 1.0, %v636
    %v638 = vtanh.pop %v631
    %v639 = vmul.f32 %v637, %v547
    %641 = vrot.lane.b32.xlu0 %v638, 32
    %v642 = vpop.permute.xlu0 %641
    %v644 = vmul.f32 %v637, %v642
    %646 = vrot.lane.b32.xlu0 %v644, 32
    %v647 = vpop.permute.xlu0 %646
    %v649 = vadd.f32 %v639, %v647
    %v650 = vtanh.pop %v649
    %652 = vrot.lane.b32.xlu0 %v650, 32
    %v653 = vpop.permute.xlu0 %652
    %v655 = vmul.f32 %v637, %v653
    %v656 = vadd.f32 %v554, %v655
    %v657 = vld [vmem:[#allocation2 + $0x14] sm:$0xf]
    %659 = vrot.lane.b32.xlu0 %v655, 64
    %v660 = vpop.permute.xlu0 %659
    %v661 = vsel %vm149, %v660, 0
    %663 = vmatprep.subr.mxu0 0.0
    %664 = vmatpush1.msra.mxu0 0.0
    %665 = vmatprep.subr.mxu0 0.0
    %666 = vmatpush1.msra.mxu0 0.0
    %667 = vmatprep.subr.mxu0 0.0
    %668 = vmatpush1.msra.mxu0 0.0
    %669 = vmatprep.subr.mxu0 0.0
    %670 = vmatpush1.msra.mxu0 0.0
    %671 = vmatprep.subr.mxu0 0.0
    %672 = vmatpush1.msra.mxu0 0.0
    %673 = vmatprep.subr.mxu0 0.0
    %674 = vmatpush1.msra.mxu0 0.0
    %675 = vmatprep.subr.mxu0 0.0
    %676 = vmatpush1.msra.mxu0 0.0
    %677 = vmatprep.subr.mxu0 0.0
    %678 = vmatpush1.msra.mxu0 0.0
    %679 = vmatprep.subr.mxu0 0.0
    %680 = vmatpush1.msra.mxu0 0.0
    %681 = vmatprep.subr.mxu0 0.0
    %682 = vmatpush1.msra.mxu0 0.0
    %683 = vmatprep.subr.mxu0 0.0
    %684 = vmatpush1.msra.mxu0 0.0
    %685 = vmatprep.subr.mxu0 0.0
    %686 = vmatpush1.msra.mxu0 0.0
    %687 = vmatprep.subr.mxu0 0.0
    %688 = vmatpush1.msra.mxu0 %v147
    %689 = vmatprep.subr.mxu0 0.0
    %690 = vmatpush1.msra.mxu0 %v146
    %691 = vmatprep.subr.mxu0 0.0
    %692 = vmatpush1.msra.mxu0 %v145
    %693 = vmatprep.subr.mxu0 0.0
    %694 = vmatpush1.msra.mxu0 %v144
    %695 = vmatprep.subr.mxu0 0.0
    %696 = vmatpush2.msra.mxu0 0.0
    %697 = vmatprep.subr.mxu0 0.0
    %698 = vmatpush2.msra.mxu0 0.0
    %699 = vmatprep.subr.mxu0 0.0
    %700 = vmatpush2.msra.mxu0 0.0
    %701 = vmatprep.subr.mxu0 0.0
    %702 = vmatpush2.msra.mxu0 0.0
    %703 = vmatprep.subr.mxu0 0.0
    %704 = vmatpush2.msra.mxu0 0.0
    %705 = vmatprep.subr.mxu0 0.0
    %706 = vmatpush2.msra.mxu0 0.0
    %707 = vmatprep.subr.mxu0 0.0
    %708 = vmatpush2.msra.mxu0 0.0
    %709 = vmatprep.subr.mxu0 0.0
    %710 = vmatpush2.msra.mxu0 0.0
    %711 = vmatprep.subr.mxu0 0.0
    %712 = vmatpush2.msra.mxu0 0.0
    %713 = vmatprep.subr.mxu0 0.0
    %714 = vmatpush2.msra.mxu0 0.0
    %715 = vmatprep.subr.mxu0 0.0
    %716 = vmatpush2.msra.mxu0 0.0
    %717 = vmatprep.subr.mxu0 0.0
    %718 = vmatpush2.msra.mxu0 0.0
    %719 = vmatprep.subr.mxu0 0.0
    %720 = vmatpush2.msra.mxu0 0.0
    %721 = vmatprep.subr.mxu0 0.0
    %722 = vmatpush2.msra.mxu0 0.0
    %723 = vmatprep.subr.mxu0 0.0
    %724 = vmatpush2.msra.mxu0 0.0
    %725 = vmatprep.subr.mxu0 0.0
    %726 = vmatpush2.msra.mxu0 0.0
    %727 = vmatprep.mubr.f32.mxu0 0.0
    %728 = vmatmul.mubr.f32.gmra.mxu0 %v661
    %v729 = vpop.f32.mrf.mxu0
    %v730 = vadd.f32 0.0, %v729
    %v731 = vpop.f32.mrf.mxu0
    %732 = vdwg.mxu0
    %v733 = vadd.f32 %v657, %v730
    %v734 = vxor.u32 %v733, 2147483648
    %v735 = vmul.f32 %v734, 1.442695
    %v736 = vpow.pop %v735
    %v737 = vadd.f32 %v736, 1.0
    %v738 = vrcp.pop %v737
    %v739 = vmul.f32 1.0, %v738
    %v740 = vtanh.pop %v733
    %v741 = vmul.f32 %v739, %v649
    %743 = vrot.lane.b32.xlu0 %v740, 32
    %v744 = vpop.permute.xlu0 %743
    %v746 = vmul.f32 %v739, %v744
    %748 = vrot.lane.b32.xlu0 %v746, 32
    %v749 = vpop.permute.xlu0 %748
    %v751 = vadd.f32 %v741, %v749
    %v752 = vtanh.pop %v751
    %754 = vrot.lane.b32.xlu0 %v752, 32
    %v755 = vpop.permute.xlu0 %754
    %v757 = vmul.f32 %v739, %v755
    %v758 = vadd.f32 %v656, %v757
    %v759 = vld [vmem:[#allocation2 + $0x18] sm:$0xf]
    %761 = vrot.lane.b32.xlu0 %v757, 64
    %v762 = vpop.permute.xlu0 %761
    %v763 = vsel %vm149, %v762, 0
    %765 = vmatprep.subr.mxu0 0.0
    %766 = vmatpush1.msra.mxu0 0.0
    %767 = vmatprep.subr.mxu0 0.0
    %768 = vmatpush1.msra.mxu0 0.0
    %769 = vmatprep.subr.mxu0 0.0
    %770 = vmatpush1.msra.mxu0 0.0
    %771 = vmatprep.subr.mxu0 0.0
    %772 = vmatpush1.msra.mxu0 0.0
    %773 = vmatprep.subr.mxu0 0.0
    %774 = vmatpush1.msra.mxu0 0.0
    %775 = vmatprep.subr.mxu0 0.0
    %776 = vmatpush1.msra.mxu0 0.0
    %777 = vmatprep.subr.mxu0 0.0
    %778 = vmatpush1.msra.mxu0 0.0
    %779 = vmatprep.subr.mxu0 0.0
    %780 = vmatpush1.msra.mxu0 0.0
    %781 = vmatprep.subr.mxu0 0.0
    %782 = vmatpush1.msra.mxu0 0.0
    %783 = vmatprep.subr.mxu0 0.0
    %784 = vmatpush1.msra.mxu0 0.0
    %785 = vmatprep.subr.mxu0 0.0
    %786 = vmatpush1.msra.mxu0 0.0
    %787 = vmatprep.subr.mxu0 0.0
    %788 = vmatpush1.msra.mxu0 0.0
    %789 = vmatprep.subr.mxu0 0.0
    %790 = vmatpush1.msra.mxu0 %v147
    %791 = vmatprep.subr.mxu0 0.0
    %792 = vmatpush1.msra.mxu0 %v146
    %793 = vmatprep.subr.mxu0 0.0
    %794 = vmatpush1.msra.mxu0 %v145
    %795 = vmatprep.subr.mxu0 0.0
    %796 = vmatpush1.msra.mxu0 %v144
    %797 = vmatprep.subr.mxu0 0.0
    %798 = vmatpush2.msra.mxu0 0.0
    %799 = vmatprep.subr.mxu0 0.0
    %800 = vmatpush2.msra.mxu0 0.0
    %801 = vmatprep.subr.mxu0 0.0
    %802 = vmatpush2.msra.mxu0 0.0
    %803 = vmatprep.subr.mxu0 0.0
    %804 = vmatpush2.msra.mxu0 0.0
    %805 = vmatprep.subr.mxu0 0.0
    %806 = vmatpush2.msra.mxu0 0.0
    %807 = vmatprep.subr.mxu0 0.0
    %808 = vmatpush2.msra.mxu0 0.0
    %809 = vmatprep.subr.mxu0 0.0
    %810 = vmatpush2.msra.mxu0 0.0
    %811 = vmatprep.subr.mxu0 0.0
    %812 = vmatpush2.msra.mxu0 0.0
    %813 = vmatprep.subr.mxu0 0.0
    %814 = vmatpush2.msra.mxu0 0.0
    %815 = vmatprep.subr.mxu0 0.0
    %816 = vmatpush2.msra.mxu0 0.0
    %817 = vmatprep.subr.mxu0 0.0
    %818 = vmatpush2.msra.mxu0 0.0
    %819 = vmatprep.subr.mxu0 0.0
    %820 = vmatpush2.msra.mxu0 0.0
    %821 = vmatprep.subr.mxu0 0.0
    %822 = vmatpush2.msra.mxu0 0.0
    %823 = vmatprep.subr.mxu0 0.0
    %824 = vmatpush2.msra.mxu0 0.0
    %825 = vmatprep.subr.mxu0 0.0
    %826 = vmatpush2.msra.mxu0 0.0
    %827 = vmatprep.subr.mxu0 0.0
    %828 = vmatpush2.msra.mxu0 0.0
    %829 = vmatprep.mubr.f32.mxu0 0.0
    %830 = vmatmul.mubr.f32.gmra.mxu0 %v763
    %v831 = vpop.f32.mrf.mxu0
    %v832 = vadd.f32 0.0, %v831
    %v833 = vpop.f32.mrf.mxu0
    %834 = vdwg.mxu0
    %v835 = vadd.f32 %v759, %v832
    %v836 = vxor.u32 %v835, 2147483648
    %v837 = vmul.f32 %v836, 1.442695
    %v838 = vpow.pop %v837
    %v839 = vadd.f32 %v838, 1.0
    %v840 = vrcp.pop %v839
    %v841 = vmul.f32 1.0, %v840
    %v842 = vtanh.pop %v835
    %v843 = vmul.f32 %v841, %v751
    %845 = vrot.lane.b32.xlu0 %v842, 32
    %v846 = vpop.permute.xlu0 %845
    %v848 = vmul.f32 %v841, %v846
    %850 = vrot.lane.b32.xlu0 %v848, 32
    %v851 = vpop.permute.xlu0 %850
    %v853 = vadd.f32 %v843, %v851
    %v854 = vtanh.pop %v853
    %856 = vrot.lane.b32.xlu0 %v854, 32
    %v857 = vpop.permute.xlu0 %856
    %v859 = vmul.f32 %v841, %v857
    %v860 = vadd.f32 %v758, %v859
    %v861 = vld [vmem:[#allocation2 + $0x1c] sm:$0xf]
    %863 = vrot.lane.b32.xlu0 %v859, 64
    %v864 = vpop.permute.xlu0 %863
    %v865 = vsel %vm149, %v864, 0
    %867 = vmatprep.subr.mxu0 0.0
    %868 = vmatpush1.msra.mxu0 0.0
    %869 = vmatprep.subr.mxu0 0.0
    %870 = vmatpush1.msra.mxu0 0.0
    %871 = vmatprep.subr.mxu0 0.0
    %872 = vmatpush1.msra.mxu0 0.0
    %873 = vmatprep.subr.mxu0 0.0
    %874 = vmatpush1.msra.mxu0 0.0
    %875 = vmatprep.subr.mxu0 0.0
    %876 = vmatpush1.msra.mxu0 0.0
    %877 = vmatprep.subr.mxu0 0.0
    %878 = vmatpush1.msra.mxu0 0.0
    %879 = vmatprep.subr.mxu0 0.0
    %880 = vmatpush1.msra.mxu0 0.0
    %881 = vmatprep.subr.mxu0 0.0
    %882 = vmatpush1.msra.mxu0 0.0
    %883 = vmatprep.subr.mxu0 0.0
    %884 = vmatpush1.msra.mxu0 0.0
    %885 = vmatprep.subr.mxu0 0.0
    %886 = vmatpush1.msra.mxu0 0.0
    %887 = vmatprep.subr.mxu0 0.0
    %888 = vmatpush1.msra.mxu0 0.0
    %889 = vmatprep.subr.mxu0 0.0
    %890 = vmatpush1.msra.mxu0 0.0
    %891 = vmatprep.subr.mxu0 0.0
    %892 = vmatpush1.msra.mxu0 %v147
    %893 = vmatprep.subr.mxu0 0.0
    %894 = vmatpush1.msra.mxu0 %v146
    %895 = vmatprep.subr.mxu0 0.0
    %896 = vmatpush1.msra.mxu0 %v145
    %897 = vmatprep.subr.mxu0 0.0
    %898 = vmatpush1.msra.mxu0 %v144
    %899 = vmatprep.subr.mxu0 0.0
    %900 = vmatpush2.msra.mxu0 0.0
    %901 = vmatprep.subr.mxu0 0.0
    %902 = vmatpush2.msra.mxu0 0.0
    %903 = vmatprep.subr.mxu0 0.0
    %904 = vmatpush2.msra.mxu0 0.0
    %905 = vmatprep.subr.mxu0 0.0
    %906 = vmatpush2.msra.mxu0 0.0
    %907 = vmatprep.subr.mxu0 0.0
    %908 = vmatpush2.msra.mxu0 0.0
    %909 = vmatprep.subr.mxu0 0.0
    %910 = vmatpush2.msra.mxu0 0.0
    %911 = vmatprep.subr.mxu0 0.0
    %912 = vmatpush2.msra.mxu0 0.0
    %913 = vmatprep.subr.mxu0 0.0
    %914 = vmatpush2.msra.mxu0 0.0
    %915 = vmatprep.subr.mxu0 0.0
    %916 = vmatpush2.msra.mxu0 0.0
    %917 = vmatprep.subr.mxu0 0.0
    %918 = vmatpush2.msra.mxu0 0.0
    %919 = vmatprep.subr.mxu0 0.0
    %920 = vmatpush2.msra.mxu0 0.0
    %921 = vmatprep.subr.mxu0 0.0
    %922 = vmatpush2.msra.mxu0 0.0
    %923 = vmatprep.subr.mxu0 0.0
    %924 = vmatpush2.msra.mxu0 0.0
    %925 = vmatprep.subr.mxu0 0.0
    %926 = vmatpush2.msra.mxu0 0.0
    %927 = vmatprep.subr.mxu0 0.0
    %928 = vmatpush2.msra.mxu0 0.0
    %929 = vmatprep.subr.mxu0 0.0
    %930 = vmatpush2.msra.mxu0 0.0
    %931 = vmatprep.mubr.f32.mxu0 0.0
    %932 = vmatmul.mubr.f32.gmra.mxu0 %v865
    %v933 = vpop.f32.mrf.mxu0
    %v934 = vadd.f32 0.0, %v933
    %v935 = vpop.f32.mrf.mxu0
    %936 = vdwg.mxu0
    %v937 = vadd.f32 %v861, %v934
    %v938 = vxor.u32 %v937, 2147483648
    %v939 = vmul.f32 %v938, 1.442695
    %v940 = vpow.pop %v939
    %v941 = vadd.f32 %v940, 1.0
    %v942 = vrcp.pop %v941
    %v943 = vmul.f32 1.0, %v942
    %v944 = vtanh.pop %v937
    %v945 = vmul.f32 %v943, %v853
    %947 = vrot.lane.b32.xlu0 %v944, 32
    %v948 = vpop.permute.xlu0 %947
    %v950 = vmul.f32 %v943, %v948
    %952 = vrot.lane.b32.xlu0 %v950, 32
    %v953 = vpop.permute.xlu0 %952
    %v955 = vadd.f32 %v945, %v953
    %v956 = vtanh.pop %v955
    %958 = vrot.lane.b32.xlu0 %v956, 32
    %v959 = vpop.permute.xlu0 %958
    %v961 = vmul.f32 %v943, %v959
    %v962 = vadd.f32 %v860, %v961
    %v963 = vmul.f32 %v962, 0.125
    %v964 = vld [vmem:[%s4] sm:$0xff]
    %v965 = vld [vmem:[%s4 + $0x8] sm:$0xff]
    %v966 = vld [vmem:[%s4 + $0x10] sm:$0xff]
    %v967 = vld [vmem:[%s4 + $0x18] sm:$0xff]
    %v968 = vld [vmem:[%s5] sm:$0x1]
    %v970 = vlaneseq
    %v971 = vshrl.u32 %v970, 7
    %v972 = vsub.s32 0, %v971
    %v973 = vrot.slane %v968, %v972
    %976 = vrot.lane.b32.xlu0 %v963, 64
    %v977 = vpop.permute.xlu0 %976
    %v978 = vsel %vm149, %v977, 0
    %980 = vmatprep.subr.mxu0 0.0
    %981 = vmatpush1.msra.mxu0 0.0
    %982 = vmatprep.subr.mxu0 0.0
    %983 = vmatpush1.msra.mxu0 0.0
    %984 = vmatprep.subr.mxu0 0.0
    %985 = vmatpush1.msra.mxu0 0.0
    %986 = vmatprep.subr.mxu0 0.0
    %987 = vmatpush1.msra.mxu0 0.0
    %988 = vmatprep.subr.mxu0 0.0
    %989 = vmatpush1.msra.mxu0 0.0
    %990 = vmatprep.subr.mxu0 0.0
    %991 = vmatpush1.msra.mxu0 0.0
    %992 = vmatprep.subr.mxu0 0.0
    %993 = vmatpush1.msra.mxu0 0.0
    %994 = vmatprep.subr.mxu0 0.0
    %995 = vmatpush1.msra.mxu0 0.0
    %996 = vmatprep.subr.mxu0 0.0
    %997 = vmatpush1.msra.mxu0 0.0
    %998 = vmatprep.subr.mxu0 0.0
    %999 = vmatpush1.msra.mxu0 0.0
    %1000 = vmatprep.subr.mxu0 0.0
    %1001 = vmatpush1.msra.mxu0 0.0
    %1002 = vmatprep.subr.mxu0 0.0
    %1003 = vmatpush1.msra.mxu0 0.0
    %1004 = vmatprep.subr.mxu0 0.0
    %1005 = vmatpush1.msra.mxu0 %v967
    %1006 = vmatprep.subr.mxu0 0.0
    %1007 = vmatpush1.msra.mxu0 %v966
    %1008 = vmatprep.subr.mxu0 0.0
    %1009 = vmatpush1.msra.mxu0 %v965
    %1010 = vmatprep.subr.mxu0 0.0
    %1011 = vmatpush1.msra.mxu0 %v964
    %1012 = vmatprep.subr.mxu0 0.0
    %1013 = vmatpush2.msra.mxu0 0.0
    %1014 = vmatprep.subr.mxu0 0.0
    %1015 = vmatpush2.msra.mxu0 0.0
    %1016 = vmatprep.subr.mxu0 0.0
    %1017 = vmatpush2.msra.mxu0 0.0
    %1018 = vmatprep.subr.mxu0 0.0
    %1019 = vmatpush2.msra.mxu0 0.0
    %1020 = vmatprep.subr.mxu0 0.0
    %1021 = vmatpush2.msra.mxu0 0.0
    %1022 = vmatprep.subr.mxu0 0.0
    %1023 = vmatpush2.msra.mxu0 0.0
    %1024 = vmatprep.subr.mxu0 0.0
    %1025 = vmatpush2.msra.mxu0 0.0
    %1026 = vmatprep.subr.mxu0 0.0
    %1027 = vmatpush2.msra.mxu0 0.0
    %1028 = vmatprep.subr.mxu0 0.0
    %1029 = vmatpush2.msra.mxu0 0.0
    %1030 = vmatprep.subr.mxu0 0.0
    %1031 = vmatpush2.msra.mxu0 0.0
    %1032 = vmatprep.subr.mxu0 0.0
    %1033 = vmatpush2.msra.mxu0 0.0
    %1034 = vmatprep.subr.mxu0 0.0
    %1035 = vmatpush2.msra.mxu0 0.0
    %1036 = vmatprep.subr.mxu0 0.0
    %1037 = vmatpush2.msra.mxu0 0.0
    %1038 = vmatprep.subr.mxu0 0.0
    %1039 = vmatpush2.msra.mxu0 0.0
    %1040 = vmatprep.subr.mxu0 0.0
    %1041 = vmatpush2.msra.mxu0 0.0
    %1042 = vmatprep.subr.mxu0 0.0
    %1043 = vmatpush2.msra.mxu0 0.0
    %1044 = vmatprep.mubr.f32.mxu0 0.0
    %1045 = vmatmul.mubr.f32.gmra.mxu0 %v978
    %v1046 = vpop.f32.mrf.mxu0
    %v1047 = vadd.f32 %v973, %v1046
    %v1048 = vpop.f32.mrf.mxu0
    %1049 = vdwg.mxu0
    %v1050 = vld [vmem:[%s6] sm:$0xff]
    %v1051 = vld [vmem:[%s6 + $0x8] sm:$0xff]
    %v1052 = vmul.f32 %v1047, %v1047
    %vm1053 = vcmask 125952
    %v1054 = vsel %vm1053, %v1052, 0.0
    %1055 = vadd.xlane.f32.xlu0 %v1054
    %v1056 = vpop.xlane.xlu0 %1055
    %v1057 = vmul.f32 %v1050, %v1050
    %v1058 = vmul.f32 %v1051, %v1051
    %vm1059 = vcmask 31744
    %v1060 = vsel %vm1059, %v1057, 0.0
    %v1061 = vsel %vm1059, %v1058, 0.0
    %v1062 = vadd.f32 %v1060, %v1061
    %v1063 = vrot.slane %v1062, 4
    %v1064 = vadd.f32 %v1062, %v1063
    %v1065 = vrot.slane %v1064, 2
    %v1066 = vadd.f32 %v1064, %v1065
    %v1067 = vrot.slane %v1066, 1
    %v1068 = vadd.f32 %v1066, %v1067
    %v1070 = vsel %vm42, %v1047, 0
    %1072 = vmatprep.subr.mxu0 0.0
    %1073 = vmatpush1.msra.mxu0 0.0
    %1074 = vmatprep.subr.mxu0 0.0
    %1075 = vmatpush1.msra.mxu0 0.0
    %1076 = vmatprep.subr.mxu0 0.0
    %1077 = vmatpush1.msra.mxu0 0.0
    %1078 = vmatprep.subr.mxu0 0.0
    %1079 = vmatpush1.msra.mxu0 0.0
    %1080 = vmatprep.subr.mxu0 0.0
    %1081 = vmatpush1.msra.mxu0 0.0
    %1082 = vmatprep.subr.mxu0 0.0
    %1083 = vmatpush1.msra.mxu0 0.0
    %1084 = vmatprep.subr.mxu0 0.0
    %1085 = vmatpush1.msra.mxu0 0.0
    %1086 = vmatprep.subr.mxu0 0.0
    %1087 = vmatpush1.msra.mxu0 0.0
    %1088 = vmatprep.subr.mxu0 0.0
    %1089 = vmatpush1.msra.mxu0 0.0
    %1090 = vmatprep.subr.mxu0 0.0
    %1091 = vmatpush1.msra.mxu0 0.0
    %1092 = vmatprep.subr.mxu0 0.0
    %1093 = vmatpush1.msra.mxu0 0.0
    %1094 = vmatprep.subr.mxu0 0.0
    %1095 = vmatpush1.msra.mxu0 0.0
    %1096 = vmatprep.subr.mxu0 0.0
    %1097 = vmatpush1.msra.mxu0 0.0
    %1098 = vmatprep.subr.mxu0 0.0
    %1099 = vmatpush1.msra.mxu0 0.0
    %1100 = vmatprep.subr.mxu0 0.0
    %1101 = vmatpush1.msra.mxu0 %v1051
    %1102 = vmatprep.subr.mxu0 0.0
    %1103 = vmatpush1.msra.mxu0 %v1050
    %1104 = vmatprep.subr.mxu0 0.0
    %1105 = vmatpush2.msra.mxu0 0.0
    %1106 = vmatprep.subr.mxu0 0.0
    %1107 = vmatpush2.msra.mxu0 0.0
    %1108 = vmatprep.subr.mxu0 0.0
    %1109 = vmatpush2.msra.mxu0 0.0
    %1110 = vmatprep.subr.mxu0 0.0
    %1111 = vmatpush2.msra.mxu0 0.0
    %1112 = vmatprep.subr.mxu0 0.0
    %1113 = vmatpush2.msra.mxu0 0.0
    %1114 = vmatprep.subr.mxu0 0.0
    %1115 = vmatpush2.msra.mxu0 0.0
    %1116 = vmatprep.subr.mxu0 0.0
    %1117 = vmatpush2.msra.mxu0 0.0
    %1118 = vmatprep.subr.mxu0 0.0
    %1119 = vmatpush2.msra.mxu0 0.0
    %1120 = vmatprep.subr.mxu0 0.0
    %1121 = vmatpush2.msra.mxu0 0.0
    %1122 = vmatprep.subr.mxu0 0.0
    %1123 = vmatpush2.msra.mxu0 0.0
    %1124 = vmatprep.subr.mxu0 0.0
    %1125 = vmatpush2.msra.mxu0 0.0
    %1126 = vmatprep.subr.mxu0 0.0
    %1127 = vmatpush2.msra.mxu0 0.0
    %1128 = vmatprep.subr.mxu0 0.0
    %1129 = vmatpush2.msra.mxu0 0.0
    %1130 = vmatprep.subr.mxu0 0.0
    %1131 = vmatpush2.msra.mxu0 0.0
    %1132 = vmatprep.subr.mxu0 0.0
    %1133 = vmatpush2.msra.mxu0 0.0
    %1134 = vmatprep.subr.mxu0 0.0
    %1135 = vmatpush2.msra.mxu0 0.0
    %1136 = vmatprep.mubr.f32.mxu0 0.0
    %1137 = vmatmul.mubr.f32.gmra.mxu0 %v1070
    %v1138 = vpop.f32.mrf.mxu0
    %v1139 = vadd.f32 0.0, %v1138
    %v1140 = vpop.f32.mrf.mxu0
    %1141 = vdwg.mxu0
    %v1142 = vadd.f32 %v1056, %v1068
    %v1143 = vmul.f32 %v1139, 2.0
    %v1144 = vsub.f32 %v1142, %v1143
    %vm1145 = vcmask 27648
    %v1146 = vsel %vm1145, %v1144, inf
    %1147 = vmin.xlane.f32.xlu0 %v1146
    %v1148 = vpop.xlane.xlu0 %1147
    %v1149 = vlaneseq
    %v1150 = vand.u32 %v1149, 127
    %vm1151 = vcmp.eq.f32.partialorder %v1144, %v1148
    %v1152 = vsel %vm1151, %v1150, 4
    %v1153 = vsel %vm1145, %v1152, 2147483647
    %v1154 = vand.u32 %v1153, 65535
    %v1155 = vshra.s32 %v1153, 16
    %v1156 = vcvt.s32.f32 %v1154
    %v1157 = vcvt.s32.f32 %v1155
    %1158 = vmin.xlane.f32.xlu0 %v1157
    %v1159 = vpop.xlane.xlu0 %1158
    %vm1160 = vcmp.eq.f32.partialorder %v1157, %v1159
    %v1161 = vsel %vm1160, %v1156, inf
    %1162 = vmin.xlane.f32.xlu0 %v1161
    %v1163 = vpop.xlane.xlu0 %1162
    %v1164 = vcvt.f32.s32 %v1163
    %v1165 = vcvt.f32.s32 %v1159
    %v1166 = vshll.u32 %v1165, 16
    %v1167 = vadd.s32 %v1166, %v1164
    %vm1168 = vcmask 3072
    %1169 = vst.msk [vmem:[%s7] sm:$0xf] %vm1168, %v1167
    %v1170 = vsub.f32 0.0, %v1144
    %v1171 = vsel %vm1145, %v1170, -inf
    %1172 = vmax.xlane.f32.xlu0 %v1171
    %v1173 = vpop.xlane.xlu0 %1172
    %v1174 = vsub.f32 %v1170, %v1173
    %v1175 = vmul.f32 %v1174, 1.442695
    %v1176 = vpow.pop %v1175
    %v1177 = vsel %vm1145, %v1176, 0.0
    %1178 = vadd.xlane.f32.xlu0 %v1177
    %v1179 = vpop.xlane.xlu0 %1178
    %v1180 = vrcp.pop %v1179
    %v1181 = vmul.f32 %v1176, %v1180
    %1182 = vst.msk [vmem:[#allocation3] sm:$0xf] %vm1145, %v1181
    // Predicated region
    $region30: #{tpu_custom_call.1} parent=1 // pred_check
      _
    $region31: #{tpu_custom_call.1} parent=1 // pred_check_branch
      %1184 = sbr.rel (0) target = $region33
    $region32: #{tpu_custom_call.1} parent=1 // pred_region
      _
    $region33: #{tpu_custom_call.1} parent=1 // pred_fallthru
      _
    // Predicated region
    $region34: #{tpu_custom_call.1} parent=1 // pred_check
      _
    $region35: #{tpu_custom_call.1} parent=1 // pred_check_branch
      %1186 = sbr.rel (0) target = $region37
    $region36: #{tpu_custom_call.1} parent=1 // pred_region
      %s1188 = ssub.s32 64, 64
      %1189 = vsyncadd [#allocation4], %s1188
      %s1191 = sshll.u32 [#allocation3], 4
      %s1192 = int_to_ptr.vmem [resolvable:$true] %s1191
      %1194 = dma.vmem_to_hbm [thread:$0]  %s1192, 64, %s8, [#allocation4]
    $region37: #{tpu_custom_call.1} parent=1 // pred_fallthru
      _
    // Predicated region
    $region38: #{tpu_custom_call.1} parent=1 // pred_check
      _
    $region39: #{tpu_custom_call.1} parent=1 // pred_check_branch
      %1196 = sbr.rel (0) target = $region41
    $region40: #{tpu_custom_call.1} parent=1 // pred_region
      _
    $region41: #{tpu_custom_call.1} parent=1 // pred_fallthru
      _
    // Predicated region
    $region42: #{tpu_custom_call.1} parent=1 // pred_check
      _
    $region43: #{tpu_custom_call.1} parent=1 // pred_check_branch
      %1198 = sbr.rel (0) target = $region45
    $region44: #{tpu_custom_call.1} parent=1 // pred_region
      %1199 = dma.done [#allocation4], 64
    $region45: #{tpu_custom_call.1} parent=1 // pred_fallthru
      _
    %1200 = vsyncpa [#allocation4], 1

</llo_original>
